<compile_context>
chip_gen: v7x
topology: tpu7x:2x2x1
jax: 0.10.0
libtpu: 0.0.40
codegen_flags: <defaults>
</compile_context>

<pallas_src>
import functools

import jax
import jax.numpy as jnp
from jax.experimental import pallas as pl
from jax.experimental.pallas import tpu as pltpu


def _grid_sample_kernel(coord_ref, inp_ref, out_ref, acc_ref, *, H, W, C, TH):
    """One (batch, H-tile) step of bilinear grid sampling.

    coord_ref: (1, 2, P)     normalized coords, row 0 = x, row 1 = y, in [-1, 1]
    inp_ref:   (1, C, TH, W) input rows [h*TH, (h+1)*TH) of the image
    out_ref:   (1, C, P)     output block (resident across the H-tile axis)
    acc_ref:   (C, P) f32    accumulator scratch
    """
    h_idx = pl.program_id(1)
    P = coord_ref.shape[-1]

    coords = coord_ref[0].astype(jnp.float32)        # (2, P)
    gx = coords[0:1, :]                              # (1, P)
    gy = coords[1:2, :]                              # (1, P)

    # align_corners=True un-normalization
    ix = (gx + 1.0) * 0.5 * (W - 1)
    iy = (gy + 1.0) * 0.5 * (H - 1)

    ix0f = jnp.floor(ix)
    iy0f = jnp.floor(iy)
    ix0 = ix0f.astype(jnp.int32)
    iy0 = iy0f.astype(jnp.int32)
    ix1 = ix0 + 1
    iy1 = iy0 + 1

    wx1 = ix - ix0f
    wx0 = 1.0 - wx1
    wy1 = iy - iy0f
    wy0 = 1.0 - wy1

    # x weights as a (W, P) "two-hot" matrix; zeros padding via validity masks.
    xr = jax.lax.broadcasted_iota(jnp.int32, (W, P), 0)
    oxw = (jnp.where((xr == ix0) & (ix0 >= 0) & (ix0 < W), wx0, 0.0)
           + jnp.where((xr == ix1) & (ix1 >= 0) & (ix1 < W), wx1, 0.0))

    # y weights for this H tile, (TH, P); global row index = h_idx*TH + local.
    yr = jax.lax.broadcasted_iota(jnp.int32, (TH, P), 0) + h_idx * TH
    oyw = (jnp.where((yr == iy0) & (iy0 >= 0) & (iy0 < H), wy0, 0.0)
           + jnp.where((yr == iy1) & (iy1 >= 0) & (iy1 < H), wy1, 0.0))

    @pl.when(h_idx == 0)
    def _():
        acc_ref[...] = jnp.zeros_like(acc_ref)

    parts = []
    for c in range(C):                                # static unroll, small C
        img = inp_ref[0, c].astype(jnp.float32)       # (TH, W)
        s = jnp.dot(img, oxw, preferred_element_type=jnp.float32)   # (TH, P)
        parts.append(jnp.sum(s * oyw, axis=0, keepdims=True))       # (1, P)
    acc_ref[...] += jnp.concatenate(parts, axis=0)    # (C, P)

    @pl.when(h_idx == pl.num_programs(1) - 1)
    def _():
        out_ref[0] = acc_ref[...].astype(out_ref.dtype)


def _pick_tile_h(H, W, C, itemsize, budget_bytes=12 * 1024 * 1024):
    """Largest H tile (divisor of H, multiple of 8) whose double-buffered input
    block fits the VMEM budget; falls back to the full H."""
    def fits(th):
        return 2 * C * th * W * itemsize <= budget_bytes
    if fits(H):
        return H
    for th in range(H - 1, 0, -1):
        if H % th == 0 and th % 8 == 0 and fits(th):
            return th
    # TODO(synk): pad H in the wrapper when it has no suitable divisor.
    return H


def grid_sample(inp, grid, *, tile_h=None):
    """Bilinear grid sample, zeros padding, align_corners=True.

    inp:  (N, C, H, W) float32      (NCHW, like PyTorch)
    grid: (N, Ho, Wo, 2) float32    last dim is (x, y) in [-1, 1]
    returns (N, C, Ho, Wo)
    """
    N, C, H, W = inp.shape
    _, Ho, Wo, _ = grid.shape
    P = Ho * Wo

    # Single (N, 2, P) coordinate array: one BlockSpec DMA instead of two.
    coords = jnp.transpose(grid.reshape(N, P, 2), (0, 2, 1))

    TH = tile_h if tile_h is not None else _pick_tile_h(H, W, C, inp.dtype.itemsize)
    if H % TH != 0:
        TH = H                      # keep blocks exact (no garbage padding rows)
    num_h = H // TH

    kernel = functools.partial(_grid_sample_kernel, H=H, W=W, C=C, TH=TH)

    out = pl.pallas_call(
        kernel,
        out_shape=jax.ShapeDtypeStruct((N, C, P), inp.dtype),
        grid_spec=pltpu.PrefetchScalarGridSpec(
            num_scalar_prefetch=0,
            grid=(N, num_h),
            in_specs=[
                pl.BlockSpec((1, 2, P), lambda n, h: (n, 0, 0)),
                pl.BlockSpec((1, C, TH, W), lambda n, h: (n, 0, h, 0)),
            ],
            out_specs=pl.BlockSpec((1, C, P), lambda n, h: (n, 0, 0)),
            scratch_shapes=[pltpu.VMEM((C, P), jnp.float32)],
        ),
        compiler_params=pltpu.CompilerParams(
            dimension_semantics=("parallel", "arbitrary"),
            vmem_limit_bytes=32 * 1024 * 1024,
        ),
    )(coords, inp)

    return out.reshape(N, C, Ho, Wo)


def _ref_grid_sample(inp, grid):
    """Pure-JAX reference (bilinear, zeros padding, align_corners=True)."""
    N, C, H, W = inp.shape

    def one(img, g):                       # img (C,H,W), g (Ho,Wo,2)
        gx, gy = g[..., 0], g[..., 1]
        ix = (gx + 1.0) * 0.5 * (W - 1)
        iy = (gy + 1.0) * 0.5 * (H - 1)
        ix0 = jnp.floor(ix).astype(jnp.int32)
        iy0 = jnp.floor(iy).astype(jnp.int32)
        ix1, iy1 = ix0 + 1, iy0 + 1
        wx1 = ix - ix0
        wx0 = 1.0 - wx1
        wy1 = iy - iy0
        wy0 = 1.0 - wy1

        def get(xi, yi):
            valid = ((xi >= 0) & (xi < W) & (yi >= 0) & (yi < H)).astype(img.dtype)
            xc = jnp.clip(xi, 0, W - 1)
            yc = jnp.clip(yi, 0, H - 1)
            return img[:, yc, xc] * valid[None]     # (C, Ho, Wo)

        return (get(ix0, iy0) * (wx0 * wy0)[None]
                + get(ix1, iy0) * (wx1 * wy0)[None]
                + get(ix0, iy1) * (wx0 * wy1)[None]
                + get(ix1, iy1) * (wx1 * wy1)[None])

    return jax.vmap(one)(inp, grid)


if __name__ == "__main__":
    key = jax.random.PRNGKey(0)
    k1, k2, k3, k4 = jax.random.split(key, 4)

    # Shapes from the PyTorch module: input (1, 2, 224, 244), grid (1, 4, 4, 2).
    inp = jax.random.uniform(k1, (1, 2, 224, 244), dtype=jnp.float32)
    grd = jax.random.uniform(k2, (1, 4, 4, 2), dtype=jnp.float32)  # like torch.rand

    out = grid_sample(inp, grd)
    jax.block_until_ready(out)
    ref = _ref_grid_sample(inp, grd)
    assert out.shape == (1, 2, 4, 4)
    assert jnp.allclose(out, ref, atol=1e-5, rtol=1e-5), "mismatch vs reference"

    # Exercise the H-tiled reduction path, N>1, and zeros padding (coords
    # outside [-1, 1]).
    inp2 = jax.random.uniform(k3, (2, 3, 32, 40), dtype=jnp.float32)
    grd2 = jax.random.uniform(k4, (2, 5, 6, 2), dtype=jnp.float32) * 2.2 - 1.1
    out2 = grid_sample(inp2, grd2, tile_h=8)
    jax.block_until_ready(out2)
    ref2 = _ref_grid_sample(inp2, grd2)
    assert jnp.allclose(out2, ref2, atol=1e-5, rtol=1e-5), "mismatch vs reference (tiled)"

    print("KERNEL_OK")
</pallas_src>

<mosaic_0001>
module attributes {stable_mosaic.version = 11 : i64} {
  func.func @_grid_sample_kernel(%arg0: i32, %arg1: i32, %arg2: memref<1x2x16xf32, #tpu.memory_space<vmem>>, %arg3: memref<1x2x224x244xf32, #tpu.memory_space<vmem>>, %arg4: memref<1x2x16xf32, #tpu.memory_space<vmem>>, %arg5: memref<2x16xf32, #tpu.memory_space<vmem>>) attributes {dimension_semantics = [#tpu.dimension_semantics<parallel>, #tpu.dimension_semantics<arbitrary>], iteration_bounds = array<i64: 1, 1>, scalar_prefetch = 0 : i64, scratch_operands = 1 : i64, tpu.core_type = #tpu.core_type<tc>, window_params = [{transform_indices = @transform_0, window_bounds = array<i64: 1, 2, 16>}, {transform_indices = @transform_1, window_bounds = array<i64: 1, 2, 224, 244>}, {transform_indices = @transform_2, window_bounds = array<i64: 1, 2, 16>}]} {
    %c0 = arith.constant 0 : index
    %c0_0 = arith.constant 0 : index
    %c0_1 = arith.constant 0 : index
    %0 = vector.load %arg2[%c0, %c0_0, %c0_1] : memref<1x2x16xf32, #tpu.memory_space<vmem>>, vector<1x2x16xf32>
    %1 = vector.shape_cast %0 : vector<1x2x16xf32> to vector<2x16xf32>
    %2 = vector.extract_strided_slice %1 {offsets = [0, 0], sizes = [1, 16], strides = [1, 1]} : vector<2x16xf32> to vector<1x16xf32>
    %3 = vector.extract_strided_slice %1 {offsets = [1, 0], sizes = [1, 16], strides = [1, 1]} : vector<2x16xf32> to vector<1x16xf32>
    %cst = arith.constant 1.000000e+00 : f32
    %4 = vector.broadcast %cst : f32 to vector<1x16xf32>
    %5 = arith.addf %2, %4 : vector<1x16xf32>
    %cst_2 = arith.constant 5.000000e-01 : f32
    %6 = vector.broadcast %cst_2 : f32 to vector<1x16xf32>
    %7 = arith.mulf %5, %6 : vector<1x16xf32>
    %cst_3 = arith.constant 2.430000e+02 : f32
    %8 = vector.broadcast %cst_3 : f32 to vector<1x16xf32>
    %9 = arith.mulf %7, %8 : vector<1x16xf32>
    %cst_4 = arith.constant 1.000000e+00 : f32
    %10 = vector.broadcast %cst_4 : f32 to vector<1x16xf32>
    %11 = arith.addf %3, %10 : vector<1x16xf32>
    %cst_5 = arith.constant 5.000000e-01 : f32
    %12 = vector.broadcast %cst_5 : f32 to vector<1x16xf32>
    %13 = arith.mulf %11, %12 : vector<1x16xf32>
    %cst_6 = arith.constant 2.230000e+02 : f32
    %14 = vector.broadcast %cst_6 : f32 to vector<1x16xf32>
    %15 = arith.mulf %13, %14 : vector<1x16xf32>
    %16 = math.floor %9 : vector<1x16xf32>
    %17 = math.floor %15 : vector<1x16xf32>
    %18 = arith.fptosi %16 : vector<1x16xf32> to vector<1x16xi32>
    %19 = arith.fptosi %17 : vector<1x16xf32> to vector<1x16xi32>
    %c1_i32 = arith.constant 1 : i32
    %20 = vector.broadcast %c1_i32 : i32 to vector<1x16xi32>
    %21 = arith.addi %18, %20 : vector<1x16xi32>
    %c1_i32_7 = arith.constant 1 : i32
    %22 = vector.broadcast %c1_i32_7 : i32 to vector<1x16xi32>
    %23 = arith.addi %19, %22 : vector<1x16xi32>
    %24 = arith.subf %9, %16 : vector<1x16xf32>
    %cst_8 = arith.constant 1.000000e+00 : f32
    %25 = vector.broadcast %cst_8 : f32 to vector<1x16xf32>
    %26 = arith.subf %25, %24 : vector<1x16xf32>
    %27 = arith.subf %15, %17 : vector<1x16xf32>
    %cst_9 = arith.constant 1.000000e+00 : f32
    %28 = vector.broadcast %cst_9 : f32 to vector<1x16xf32>
    %29 = arith.subf %28, %27 : vector<1x16xf32>
    %30 = tpu.iota {dimensions = array<i32: 0>} : vector<244x16xi32>
    %31 = vector.broadcast %18 : vector<1x16xi32> to vector<244x16xi32>
    %32 = arith.cmpi eq, %30, %31 : vector<244x16xi32>
    %c0_i32 = arith.constant 0 : i32
    %33 = vector.broadcast %c0_i32 : i32 to vector<1x16xi32>
    %34 = arith.cmpi sge, %18, %33 : vector<1x16xi32>
    %35 = vector.broadcast %34 : vector<1x16xi1> to vector<244x16xi1>
    %36 = arith.andi %32, %35 : vector<244x16xi1>
    %c244_i32 = arith.constant 244 : i32
    %37 = vector.broadcast %c244_i32 : i32 to vector<1x16xi32>
    %38 = arith.cmpi slt, %18, %37 : vector<1x16xi32>
    %39 = vector.broadcast %38 : vector<1x16xi1> to vector<244x16xi1>
    %40 = arith.andi %36, %39 : vector<244x16xi1>
    %cst_10 = arith.constant 0.000000e+00 : f32
    %41 = vector.shape_cast %26 : vector<1x16xf32> to vector<1x16xf32>
    %42 = vector.broadcast %41 : vector<1x16xf32> to vector<244x16xf32>
    %43 = vector.broadcast %cst_10 : f32 to vector<244x16xf32>
    %44 = arith.select %40, %42, %43 : vector<244x16xi1>, vector<244x16xf32>
    %45 = vector.broadcast %21 : vector<1x16xi32> to vector<244x16xi32>
    %46 = arith.cmpi eq, %30, %45 : vector<244x16xi32>
    %c0_i32_11 = arith.constant 0 : i32
    %47 = vector.broadcast %c0_i32_11 : i32 to vector<1x16xi32>
    %48 = arith.cmpi sge, %21, %47 : vector<1x16xi32>
    %49 = vector.broadcast %48 : vector<1x16xi1> to vector<244x16xi1>
    %50 = arith.andi %46, %49 : vector<244x16xi1>
    %c244_i32_12 = arith.constant 244 : i32
    %51 = vector.broadcast %c244_i32_12 : i32 to vector<1x16xi32>
    %52 = arith.cmpi slt, %21, %51 : vector<1x16xi32>
    %53 = vector.broadcast %52 : vector<1x16xi1> to vector<244x16xi1>
    %54 = arith.andi %50, %53 : vector<244x16xi1>
    %cst_13 = arith.constant 0.000000e+00 : f32
    %55 = vector.shape_cast %24 : vector<1x16xf32> to vector<1x16xf32>
    %56 = vector.broadcast %55 : vector<1x16xf32> to vector<244x16xf32>
    %57 = vector.broadcast %cst_13 : f32 to vector<244x16xf32>
    %58 = arith.select %54, %56, %57 : vector<244x16xi1>, vector<244x16xf32>
    %59 = arith.addf %44, %58 : vector<244x16xf32>
    %60 = tpu.iota {dimensions = array<i32: 0>} : vector<224x16xi32>
    %c224_i32 = arith.constant 224 : i32
    %61 = arith.muli %arg1, %c224_i32 : i32
    %62 = vector.broadcast %61 : i32 to vector<224x16xi32>
    %63 = arith.addi %60, %62 : vector<224x16xi32>
    %64 = vector.broadcast %19 : vector<1x16xi32> to vector<224x16xi32>
    %65 = arith.cmpi eq, %63, %64 : vector<224x16xi32>
    %c0_i32_14 = arith.constant 0 : i32
    %66 = vector.broadcast %c0_i32_14 : i32 to vector<1x16xi32>
    %67 = arith.cmpi sge, %19, %66 : vector<1x16xi32>
    %68 = vector.broadcast %67 : vector<1x16xi1> to vector<224x16xi1>
    %69 = arith.andi %65, %68 : vector<224x16xi1>
    %c224_i32_15 = arith.constant 224 : i32
    %70 = vector.broadcast %c224_i32_15 : i32 to vector<1x16xi32>
    %71 = arith.cmpi slt, %19, %70 : vector<1x16xi32>
    %72 = vector.broadcast %71 : vector<1x16xi1> to vector<224x16xi1>
    %73 = arith.andi %69, %72 : vector<224x16xi1>
    %cst_16 = arith.constant 0.000000e+00 : f32
    %74 = vector.shape_cast %29 : vector<1x16xf32> to vector<1x16xf32>
    %75 = vector.broadcast %74 : vector<1x16xf32> to vector<224x16xf32>
    %76 = vector.broadcast %cst_16 : f32 to vector<224x16xf32>
    %77 = arith.select %73, %75, %76 : vector<224x16xi1>, vector<224x16xf32>
    %78 = vector.broadcast %23 : vector<1x16xi32> to vector<224x16xi32>
    %79 = arith.cmpi eq, %63, %78 : vector<224x16xi32>
    %c0_i32_17 = arith.constant 0 : i32
    %80 = vector.broadcast %c0_i32_17 : i32 to vector<1x16xi32>
    %81 = arith.cmpi sge, %23, %80 : vector<1x16xi32>
    %82 = vector.broadcast %81 : vector<1x16xi1> to vector<224x16xi1>
    %83 = arith.andi %79, %82 : vector<224x16xi1>
    %c224_i32_18 = arith.constant 224 : i32
    %84 = vector.broadcast %c224_i32_18 : i32 to vector<1x16xi32>
    %85 = arith.cmpi slt, %23, %84 : vector<1x16xi32>
    %86 = vector.broadcast %85 : vector<1x16xi1> to vector<224x16xi1>
    %87 = arith.andi %83, %86 : vector<224x16xi1>
    %cst_19 = arith.constant 0.000000e+00 : f32
    %88 = vector.shape_cast %27 : vector<1x16xf32> to vector<1x16xf32>
    %89 = vector.broadcast %88 : vector<1x16xf32> to vector<224x16xf32>
    %90 = vector.broadcast %cst_19 : f32 to vector<224x16xf32>
    %91 = arith.select %87, %89, %90 : vector<224x16xi1>, vector<224x16xf32>
    %92 = arith.addf %77, %91 : vector<224x16xf32>
    %c0_i32_20 = arith.constant 0 : i32
    %93 = arith.cmpi eq, %arg1, %c0_i32_20 : i32
    %94 = arith.extui %93 : i1 to i32
    %c0_i32_21 = arith.constant 0 : i32
    %95 = arith.cmpi ne, %94, %c0_i32_21 : i32
    scf.if %95 {
      %cst_39 = arith.constant 0.000000e+00 : f32
      %115 = vector.broadcast %cst_39 : f32 to vector<2x16xf32>
      %c0_40 = arith.constant 0 : index
      %c0_41 = arith.constant 0 : index
      %116 = vector.load %arg5[%c0_40, %c0_41] : memref<2x16xf32, #tpu.memory_space<vmem>>, vector<2x16xf32>
      tpu.vector_store %arg5[%c0_40, %c0_41], %115 {strides = array<i32>} : memref<2x16xf32, #tpu.memory_space<vmem>>, vector<2x16xf32>,
    } else {
    }
    %c0_22 = arith.constant 0 : index
    %c0_23 = arith.constant 0 : index
    %c0_24 = arith.constant 0 : index
    %c0_25 = arith.constant 0 : index
    %96 = vector.load %arg3[%c0_22, %c0_23, %c0_24, %c0_25] : memref<1x2x224x244xf32, #tpu.memory_space<vmem>>, vector<1x1x224x244xf32>
    %97 = vector.shape_cast %96 : vector<1x1x224x244xf32> to vector<224x244xf32>
    %cst_26 = arith.constant dense<0.000000e+00> : vector<224x16xf32>
    %98 = tpu.matmul %97, %59, %cst_26 {dimension_numbers = #tpu.dot_dimension_numbers<[1], [0], [0], [1], [0, 0, 1, 1], [], []>} : vector<224x244xf32>, vector<244x16xf32>, vector<224x16xf32> -> vector<224x16xf32>
    %99 = arith.mulf %98, %92 : vector<224x16xf32>
    %cst_27 = arith.constant dense<0.000000e+00> : vector<16xf32>
    %100 = vector.multi_reduction <add>, %99, %cst_27 [0] : vector<224x16xf32> to vector<16xf32>
    %101 = vector.shape_cast %100 : vector<16xf32> to vector<1x16xf32>
    %c0_28 = arith.constant 0 : index
    %c1 = arith.constant 1 : index
    %c0_29 = arith.constant 0 : index
    %c0_30 = arith.constant 0 : index
    %102 = vector.load %arg3[%c0_28, %c1, %c0_29, %c0_30] : memref<1x2x224x244xf32, #tpu.memory_space<vmem>>, vector<1x1x224x244xf32>
    %103 = vector.shape_cast %102 : vector<1x1x224x244xf32> to vector<224x244xf32>
    %cst_31 = arith.constant dense<0.000000e+00> : vector<224x16xf32>
    %104 = tpu.matmul %103, %59, %cst_31 {dimension_numbers = #tpu.dot_dimension_numbers<[1], [0], [0], [1], [0, 0, 1, 1], [], []>} : vector<224x244xf32>, vector<244x16xf32>, vector<224x16xf32> -> vector<224x16xf32>
    %105 = arith.mulf %104, %92 : vector<224x16xf32>
    %cst_32 = arith.constant dense<0.000000e+00> : vector<16xf32>
    %106 = vector.multi_reduction <add>, %105, %cst_32 [0] : vector<224x16xf32> to vector<16xf32>
    %107 = vector.shape_cast %106 : vector<16xf32> to vector<1x16xf32>
    %c0_33 = arith.constant 0 : index
    %c0_34 = arith.constant 0 : index
    %108 = vector.load %arg5[%c0_33, %c0_34] : memref<2x16xf32, #tpu.memory_space<vmem>>, vector<2x16xf32>
    %109 = tpu.concatenate %101, %107 in 0 : vector<1x16xf32>, vector<1x16xf32> -> vector<2x16xf32>
    %110 = arith.addf %108, %109 : vector<2x16xf32>
    %c0_35 = arith.constant 0 : index
    %c0_36 = arith.constant 0 : index
    %111 = vector.load %arg5[%c0_35, %c0_36] : memref<2x16xf32, #tpu.memory_space<vmem>>, vector<2x16xf32>
    tpu.vector_store %arg5[%c0_35, %c0_36], %110 {strides = array<i32>} : memref<2x16xf32, #tpu.memory_space<vmem>>, vector<2x16xf32>,
    %c0_i32_37 = arith.constant 0 : i32
    %112 = arith.cmpi eq, %arg1, %c0_i32_37 : i32
    %113 = arith.extui %112 : i1 to i32
    %c0_i32_38 = arith.constant 0 : i32
    %114 = arith.cmpi ne, %113, %c0_i32_38 : i32
    scf.if %114 {
      %c0_39 = arith.constant 0 : index
      %c0_40 = arith.constant 0 : index
      %115 = vector.load %arg5[%c0_39, %c0_40] : memref<2x16xf32, #tpu.memory_space<vmem>>, vector<2x16xf32>
      %c0_41 = arith.constant 0 : index
      %c0_42 = arith.constant 0 : index
      %c0_43 = arith.constant 0 : index
      %116 = vector.load %arg4[%c0_41, %c0_42, %c0_43] : memref<1x2x16xf32, #tpu.memory_space<vmem>>, vector<1x2x16xf32>
      %117 = vector.shape_cast %116 : vector<1x2x16xf32> to vector<2x16xf32>
      %118 = vector.shape_cast %115 : vector<2x16xf32> to vector<1x2x16xf32>
      tpu.vector_store %arg4[%c0_41, %c0_42, %c0_43], %118 {strides = array<i32>} : memref<1x2x16xf32, #tpu.memory_space<vmem>>, vector<1x2x16xf32>,
    } else {
    }
    return
  }
  func.func @transform_0(%arg0: i32, %arg1: i32) -> (i32, i32, i32) {
    %c0_i32 = arith.constant 0 : i32
    %c0_i32_0 = arith.constant 0 : i32
    %c0_i32_1 = arith.constant 0 : i32
    return %arg0, %c0_i32, %c0_i32_0 : i32, i32, i32
  }
  func.func @transform_1(%arg0: i32, %arg1: i32) -> (i32, i32, i32, i32) {
    %c0_i32 = arith.constant 0 : i32
    %c0_i32_0 = arith.constant 0 : i32
    %c0_i32_1 = arith.constant 0 : i32
    return %arg0, %c0_i32, %arg1, %c0_i32_0 : i32, i32, i32, i32
  }
  func.func @transform_2(%arg0: i32, %arg1: i32) -> (i32, i32, i32) {
    %c0_i32 = arith.constant 0 : i32
    %c0_i32_0 = arith.constant 0 : i32
    %c0_i32_1 = arith.constant 0 : i32
    return %arg0, %c0_i32, %c0_i32_0 : i32, i32, i32
  }
}

</mosaic_0001>

<llo_original>
// kernel: tpu_custom_call.1
$region0: #{tpu_custom_call.1}
  #allocation0 [shape = 'u32[]', space=smem, size = 0x4, offset = 0x4, fixed_abs, tag = 'smem constant byte address 0x4 - core index']
  #allocation1 [shape = 'u32[144,128]{1,0:T(1,128)}', space=vmem, size = 0x12000, scoped, tag = 'internal scratch']
  #allocation2 [shape = 'f32[2,16]{1,0:T(2,128)}', space=vmem, size = 0x400, scoped, tag = 'scratch operand']
  %s0 = inlined_call_operand.hbm [shape: f32[1,2,16], index: 0, kind: input, shape index: {}]
  %s1 = inlined_call_operand.hbm [shape: f32[1,2,224,244], index: 1, kind: input, shape index: {}]
  %s2 = inlined_call_operand.hbm [shape: f32[1,2,16], index: 2, kind: output, shape index: {}]
  %s3 = sld [smem:[#allocation0]]
  $region34: #{tpu_custom_call.1} parent=0
    _
  %s5 = ssub.s32 1, %s3
  %s6 = scalar_select 0, %s5, %s3
  $region1: #{tpu_custom_call.1} parent=0
    #allocation3 [shape = 'u8[1024]{0}', space=vmem, size = 0x400, scoped, tag = 'input window, operand 0, single buffered']
    #allocation4 [shape = 's32[1]{0}', space=sflag, size = 0x4, scoped, tag = 'scoped memory for tpu_custom_call.1']
    #allocation5 [shape = 's32[1]{0}', space=sflag, size = 0x4, scoped, tag = 'scoped memory for tpu_custom_call.1']
    #allocation6 [shape = 'u8[458752]{0}', space=vmem, size = 0x70000, scoped, tag = 'input window, operand 1, single buffered']
    #allocation7 [shape = 's32[1]{0}', space=sflag, size = 0x4, scoped, tag = 'scoped memory for tpu_custom_call.1']
    #allocation8 [shape = 'u8[1024]{0}', space=vmem, size = 0x400, scoped, tag = 'output window, operand 0, single buffered']
    %7 = vsyncpa [#allocation4], 0
    %8 = vsyncpa [#allocation7], 0
    %9 = vsyncpa [#allocation5], 0
    // Predicated region
    $region2: #{tpu_custom_call.1} parent=1 // pred_check
      _
    $region3: #{tpu_custom_call.1} parent=1 // pred_check_branch
      %11 = sbr.rel (0) target = $region5
    $region4: #{tpu_custom_call.1} parent=1 // pred_region
      %s13 = ssub.s32 32, 32
      %14 = vsyncadd [#allocation4], %s13
      %s16 = sshll.u32 [#allocation3], 4
      %s17 = int_to_ptr.vmem [resolvable:$true] %s16
      %19 = dma.hbm_to_vmem [thread:$0]  %s0, 32, %s17, [#allocation4]
    $region5: #{tpu_custom_call.1} parent=1 // pred_fallthru
      _
    // Predicated region
    $region6: #{tpu_custom_call.1} parent=1 // pred_check
      _
    $region7: #{tpu_custom_call.1} parent=1 // pred_check_branch
      %21 = sbr.rel (0) target = $region9
    $region8: #{tpu_custom_call.1} parent=1 // pred_region
      %s23 = ssub.s32 14336, 14336
      %24 = vsyncadd [#allocation7], %s23
      %s25 = sshll.u32 [#allocation6], 4
      %s26 = int_to_ptr.vmem [resolvable:$true] %s25
      %31 = dma.hbm_to_vmem [thread:$0]  %s1, 14336, %s26, [#allocation7], 256, 256, 16
    $region9: #{tpu_custom_call.1} parent=1 // pred_fallthru
      _
    // Predicated region
    $region10: #{tpu_custom_call.1} parent=1 // pred_check
      _
    $region11: #{tpu_custom_call.1} parent=1 // pred_check_branch
      %33 = sbr.rel (0) target = $region13
    $region12: #{tpu_custom_call.1} parent=1 // pred_region
      %34 = dma.done [#allocation4], 32
    $region13: #{tpu_custom_call.1} parent=1 // pred_fallthru
      _
    // Predicated region
    $region14: #{tpu_custom_call.1} parent=1 // pred_check
      _
    $region15: #{tpu_custom_call.1} parent=1 // pred_check_branch
      %36 = sbr.rel (0) target = $region17
    $region16: #{tpu_custom_call.1} parent=1 // pred_region
      %37 = dma.done [#allocation7], 14336
    $region17: #{tpu_custom_call.1} parent=1 // pred_fallthru
      _
    %v38 = vld [vmem:[#allocation3] sm:$0x3]
    %v39 = vadd.f32 %v38, 1.0
    %v40 = vmul.f32 %v39, 0.5
    %v41 = vmul.f32 %v40, 243.0
    %v42 = vmul.f32 %v40, 223.0
    %v43 = vfloor.f32 %v41
    %v44 = vfloor.f32 %v42
    %v45 = vcvt.f32.s32.to.zero.pseudo %v43
    %v46 = vcvt.f32.s32.to.zero.pseudo %v44
    %v47 = vadd.s32 %v45, 1
    %v48 = vadd.s32 %v46, 1
    %v49 = vsub.f32 %v41, %v43
    %v50 = vsub.f32 1.0, %v49
    %v51 = vsub.f32 %v42, %v44
    %v52 = vsub.f32 1.0, %v51
    %v53 = vlaneseq
    %v54 = vshrl.u32 %v53, 7
    %v55 = vadd.s32 %v54, 8
    %v56 = vadd.s32 %v54, 16
    %v57 = vadd.s32 %v54, 24
    %v58 = vadd.s32 %v54, 32
    %v59 = vadd.s32 %v54, 40
    %v60 = vadd.s32 %v54, 48
    %v61 = vadd.s32 %v54, 56
    %v62 = vadd.s32 %v54, 64
    %v63 = vadd.s32 %v54, 72
    %v64 = vadd.s32 %v54, 80
    %v65 = vadd.s32 %v54, 88
    %v66 = vadd.s32 %v54, 96
    %v67 = vadd.s32 %v54, 104
    %v68 = vadd.s32 %v54, 112
    %v69 = vadd.s32 %v54, 120
    %v70 = vadd.s32 %v54, 128
    %v71 = vadd.s32 %v54, 136
    %v72 = vadd.s32 %v54, 144
    %v73 = vadd.s32 %v54, 152
    %v74 = vadd.s32 %v54, 160
    %v75 = vadd.s32 %v54, 168
    %v76 = vadd.s32 %v54, 176
    %v77 = vadd.s32 %v54, 184
    %v78 = vadd.s32 %v54, 192
    %v79 = vadd.s32 %v54, 200
    %v80 = vadd.s32 %v54, 208
    %v81 = vadd.s32 %v54, 216
    %v82 = vadd.s32 %v54, 224
    %v83 = vadd.s32 %v54, 232
    %v84 = vadd.s32 %v54, 240
    %v85 = vlaneseq
    %v86 = vshrl.u32 %v85, 7
    %v87 = vsub.s32 0, %v86
    %v88 = vrot.slane %v45, %v87
    %vm89 = vcmp.eq.s32.totalorder %v54, %v88
    %vm90 = vcmp.eq.s32.totalorder %v55, %v88
    %vm91 = vcmp.eq.s32.totalorder %v56, %v88
    %vm92 = vcmp.eq.s32.totalorder %v57, %v88
    %vm93 = vcmp.eq.s32.totalorder %v58, %v88
    %vm94 = vcmp.eq.s32.totalorder %v59, %v88
    %vm95 = vcmp.eq.s32.totalorder %v60, %v88
    %vm96 = vcmp.eq.s32.totalorder %v61, %v88
    %vm97 = vcmp.eq.s32.totalorder %v62, %v88
    %vm98 = vcmp.eq.s32.totalorder %v63, %v88
    %vm99 = vcmp.eq.s32.totalorder %v64, %v88
    %vm100 = vcmp.eq.s32.totalorder %v65, %v88
    %vm101 = vcmp.eq.s32.totalorder %v66, %v88
    %vm102 = vcmp.eq.s32.totalorder %v67, %v88
    %vm103 = vcmp.eq.s32.totalorder %v68, %v88
    %vm104 = vcmp.eq.s32.totalorder %v69, %v88
    %vm105 = vcmp.eq.s32.totalorder %v70, %v88
    %vm106 = vcmp.eq.s32.totalorder %v71, %v88
    %vm107 = vcmp.eq.s32.totalorder %v72, %v88
    %vm108 = vcmp.eq.s32.totalorder %v73, %v88
    %vm109 = vcmp.eq.s32.totalorder %v74, %v88
    %vm110 = vcmp.eq.s32.totalorder %v75, %v88
    %vm111 = vcmp.eq.s32.totalorder %v76, %v88
    %vm112 = vcmp.eq.s32.totalorder %v77, %v88
    %vm113 = vcmp.eq.s32.totalorder %v78, %v88
    %vm114 = vcmp.eq.s32.totalorder %v79, %v88
    %vm115 = vcmp.eq.s32.totalorder %v80, %v88
    %vm116 = vcmp.eq.s32.totalorder %v81, %v88
    %vm117 = vcmp.eq.s32.totalorder %v82, %v88
    %vm118 = vcmp.eq.s32.totalorder %v83, %v88
    %vm119 = vcmp.eq.s32.totalorder %v84, %v88
    %vm120 = vcmp.ge.s32.totalorder %v45, 0
    %v121 = vsel %vm120, 1, 0
    %v122 = vlaneseq
    %v123 = vshrl.u32 %v122, 7
    %v124 = vsub.s32 0, %v123
    %v125 = vrot.slane %v121, %v124
    %vm126 = vcmp.eq.s32.totalorder %v125, 1
    %vm127 = vmand %vm89, %vm126
    %vm128 = vmand %vm90, %vm126
    %vm129 = vmand %vm91, %vm126
    %vm130 = vmand %vm92, %vm126
    %vm131 = vmand %vm93, %vm126
    %vm132 = vmand %vm94, %vm126
    %vm133 = vmand %vm95, %vm126
    %vm134 = vmand %vm96, %vm126
    %vm135 = vmand %vm97, %vm126
    %vm136 = vmand %vm98, %vm126
    %vm137 = vmand %vm99, %vm126
    %vm138 = vmand %vm100, %vm126
    %vm139 = vmand %vm101, %vm126
    %vm140 = vmand %vm102, %vm126
    %vm141 = vmand %vm103, %vm126
    %vm142 = vmand %vm104, %vm126
    %vm143 = vmand %vm105, %vm126
    %vm144 = vmand %vm106, %vm126
    %vm145 = vmand %vm107, %vm126
    %vm146 = vmand %vm108, %vm126
    %vm147 = vmand %vm109, %vm126
    %vm148 = vmand %vm110, %vm126
    %vm149 = vmand %vm111, %vm126
    %vm150 = vmand %vm112, %vm126
    %vm151 = vmand %vm113, %vm126
    %vm152 = vmand %vm114, %vm126
    %vm153 = vmand %vm115, %vm126
    %vm154 = vmand %vm116, %vm126
    %vm155 = vmand %vm117, %vm126
    %vm156 = vmand %vm118, %vm126
    %vm157 = vmand %vm119, %vm126
    %vm158 = vcmp.lt.s32.totalorder %v45, 244
    %v159 = vsel %vm158, 1, 0
    %v160 = vlaneseq
    %v161 = vshrl.u32 %v160, 7
    %v162 = vsub.s32 0, %v161
    %v163 = vrot.slane %v159, %v162
    %vm164 = vcmp.eq.s32.totalorder %v163, 1
    %vm165 = vmand %vm127, %vm164
    %vm166 = vmand %vm128, %vm164
    %vm167 = vmand %vm129, %vm164
    %vm168 = vmand %vm130, %vm164
    %vm169 = vmand %vm131, %vm164
    %vm170 = vmand %vm132, %vm164
    %vm171 = vmand %vm133, %vm164
    %vm172 = vmand %vm134, %vm164
    %vm173 = vmand %vm135, %vm164
    %vm174 = vmand %vm136, %vm164
    %vm175 = vmand %vm137, %vm164
    %vm176 = vmand %vm138, %vm164
    %vm177 = vmand %vm139, %vm164
    %vm178 = vmand %vm140, %vm164
    %vm179 = vmand %vm141, %vm164
    %vm180 = vmand %vm142, %vm164
    %vm181 = vmand %vm143, %vm164
    %vm182 = vmand %vm144, %vm164
    %vm183 = vmand %vm145, %vm164
    %vm184 = vmand %vm146, %vm164
    %vm185 = vmand %vm147, %vm164
    %vm186 = vmand %vm148, %vm164
    %vm187 = vmand %vm149, %vm164
    %vm188 = vmand %vm150, %vm164
    %vm189 = vmand %vm151, %vm164
    %vm190 = vmand %vm152, %vm164
    %vm191 = vmand %vm153, %vm164
    %vm192 = vmand %vm154, %vm164
    %vm193 = vmand %vm155, %vm164
    %vm194 = vmand %vm156, %vm164
    %vm195 = vmand %vm157, %vm164
    %v196 = vlaneseq
    %v197 = vshrl.u32 %v196, 7
    %v198 = vsub.s32 0, %v197
    %v199 = vrot.slane %v50, %v198
    %v200 = vsel %vm165, %v199, 0.0
    %v201 = vsel %vm166, %v199, 0.0
    %v202 = vsel %vm167, %v199, 0.0
    %v203 = vsel %vm168, %v199, 0.0
    %v204 = vsel %vm169, %v199, 0.0
    %v205 = vsel %vm170, %v199, 0.0
    %v206 = vsel %vm171, %v199, 0.0
    %v207 = vsel %vm172, %v199, 0.0
    %v208 = vsel %vm173, %v199, 0.0
    %v209 = vsel %vm174, %v199, 0.0
    %v210 = vsel %vm175, %v199, 0.0
    %v211 = vsel %vm176, %v199, 0.0
    %v212 = vsel %vm177, %v199, 0.0
    %v213 = vsel %vm178, %v199, 0.0
    %v214 = vsel %vm179, %v199, 0.0
    %v215 = vsel %vm180, %v199, 0.0
    %v216 = vsel %vm181, %v199, 0.0
    %v217 = vsel %vm182, %v199, 0.0
    %v218 = vsel %vm183, %v199, 0.0
    %v219 = vsel %vm184, %v199, 0.0
    %v220 = vsel %vm185, %v199, 0.0
    %v221 = vsel %vm186, %v199, 0.0
    %v222 = vsel %vm187, %v199, 0.0
    %v223 = vsel %vm188, %v199, 0.0
    %v224 = vsel %vm189, %v199, 0.0
    %v225 = vsel %vm190, %v199, 0.0
    %v226 = vsel %vm191, %v199, 0.0
    %v227 = vsel %vm192, %v199, 0.0
    %v228 = vsel %vm193, %v199, 0.0
    %v229 = vsel %vm194, %v199, 0.0
    %v230 = vsel %vm195, %v199, 0.0
    %v231 = vlaneseq
    %v232 = vshrl.u32 %v231, 7
    %v233 = vsub.s32 0, %v232
    %v234 = vrot.slane %v47, %v233
    %vm235 = vcmp.eq.s32.totalorder %v54, %v234
    %vm236 = vcmp.eq.s32.totalorder %v55, %v234
    %vm237 = vcmp.eq.s32.totalorder %v56, %v234
    %vm238 = vcmp.eq.s32.totalorder %v57, %v234
    %vm239 = vcmp.eq.s32.totalorder %v58, %v234
    %vm240 = vcmp.eq.s32.totalorder %v59, %v234
    %vm241 = vcmp.eq.s32.totalorder %v60, %v234
    %vm242 = vcmp.eq.s32.totalorder %v61, %v234
    %vm243 = vcmp.eq.s32.totalorder %v62, %v234
    %vm244 = vcmp.eq.s32.totalorder %v63, %v234
    %vm245 = vcmp.eq.s32.totalorder %v64, %v234
    %vm246 = vcmp.eq.s32.totalorder %v65, %v234
    %vm247 = vcmp.eq.s32.totalorder %v66, %v234
    %vm248 = vcmp.eq.s32.totalorder %v67, %v234
    %vm249 = vcmp.eq.s32.totalorder %v68, %v234
    %vm250 = vcmp.eq.s32.totalorder %v69, %v234
    %vm251 = vcmp.eq.s32.totalorder %v70, %v234
    %vm252 = vcmp.eq.s32.totalorder %v71, %v234
    %vm253 = vcmp.eq.s32.totalorder %v72, %v234
    %vm254 = vcmp.eq.s32.totalorder %v73, %v234
    %vm255 = vcmp.eq.s32.totalorder %v74, %v234
    %vm256 = vcmp.eq.s32.totalorder %v75, %v234
    %vm257 = vcmp.eq.s32.totalorder %v76, %v234
    %vm258 = vcmp.eq.s32.totalorder %v77, %v234
    %vm259 = vcmp.eq.s32.totalorder %v78, %v234
    %vm260 = vcmp.eq.s32.totalorder %v79, %v234
    %vm261 = vcmp.eq.s32.totalorder %v80, %v234
    %vm262 = vcmp.eq.s32.totalorder %v81, %v234
    %vm263 = vcmp.eq.s32.totalorder %v82, %v234
    %vm264 = vcmp.eq.s32.totalorder %v83, %v234
    %vm265 = vcmp.eq.s32.totalorder %v84, %v234
    %vm266 = vcmp.ge.s32.totalorder %v47, 0
    %v267 = vsel %vm266, 1, 0
    %v268 = vlaneseq
    %v269 = vshrl.u32 %v268, 7
    %v270 = vsub.s32 0, %v269
    %v271 = vrot.slane %v267, %v270
    %vm272 = vcmp.eq.s32.totalorder %v271, 1
    %vm273 = vmand %vm235, %vm272
    %vm274 = vmand %vm236, %vm272
    %vm275 = vmand %vm237, %vm272
    %vm276 = vmand %vm238, %vm272
    %vm277 = vmand %vm239, %vm272
    %vm278 = vmand %vm240, %vm272
    %vm279 = vmand %vm241, %vm272
    %vm280 = vmand %vm242, %vm272
    %vm281 = vmand %vm243, %vm272
    %vm282 = vmand %vm244, %vm272
    %vm283 = vmand %vm245, %vm272
    %vm284 = vmand %vm246, %vm272
    %vm285 = vmand %vm247, %vm272
    %vm286 = vmand %vm248, %vm272
    %vm287 = vmand %vm249, %vm272
    %vm288 = vmand %vm250, %vm272
    %vm289 = vmand %vm251, %vm272
    %vm290 = vmand %vm252, %vm272
    %vm291 = vmand %vm253, %vm272
    %vm292 = vmand %vm254, %vm272
    %vm293 = vmand %vm255, %vm272
    %vm294 = vmand %vm256, %vm272
    %vm295 = vmand %vm257, %vm272
    %vm296 = vmand %vm258, %vm272
    %vm297 = vmand %vm259, %vm272
    %vm298 = vmand %vm260, %vm272
    %vm299 = vmand %vm261, %vm272
    %vm300 = vmand %vm262, %vm272
    %vm301 = vmand %vm263, %vm272
    %vm302 = vmand %vm264, %vm272
    %vm303 = vmand %vm265, %vm272
    %vm304 = vcmp.lt.s32.totalorder %v47, 244
    %v305 = vsel %vm304, 1, 0
    %v306 = vlaneseq
    %v307 = vshrl.u32 %v306, 7
    %v308 = vsub.s32 0, %v307
    %v309 = vrot.slane %v305, %v308
    %vm310 = vcmp.eq.s32.totalorder %v309, 1
    %vm311 = vmand %vm273, %vm310
    %vm312 = vmand %vm274, %vm310
    %vm313 = vmand %vm275, %vm310
    %vm314 = vmand %vm276, %vm310
    %vm315 = vmand %vm277, %vm310
    %vm316 = vmand %vm278, %vm310
    %vm317 = vmand %vm279, %vm310
    %vm318 = vmand %vm280, %vm310
    %vm319 = vmand %vm281, %vm310
    %vm320 = vmand %vm282, %vm310
    %vm321 = vmand %vm283, %vm310
    %vm322 = vmand %vm284, %vm310
    %vm323 = vmand %vm285, %vm310
    %vm324 = vmand %vm286, %vm310
    %vm325 = vmand %vm287, %vm310
    %vm326 = vmand %vm288, %vm310
    %vm327 = vmand %vm289, %vm310
    %vm328 = vmand %vm290, %vm310
    %vm329 = vmand %vm291, %vm310
    %vm330 = vmand %vm292, %vm310
    %vm331 = vmand %vm293, %vm310
    %vm332 = vmand %vm294, %vm310
    %vm333 = vmand %vm295, %vm310
    %vm334 = vmand %vm296, %vm310
    %vm335 = vmand %vm297, %vm310
    %vm336 = vmand %vm298, %vm310
    %vm337 = vmand %vm299, %vm310
    %vm338 = vmand %vm300, %vm310
    %vm339 = vmand %vm301, %vm310
    %vm340 = vmand %vm302, %vm310
    %vm341 = vmand %vm303, %vm310
    %v342 = vlaneseq
    %v343 = vshrl.u32 %v342, 7
    %v344 = vsub.s32 0, %v343
    %v345 = vrot.slane %v49, %v344
    %v346 = vsel %vm311, %v345, 0.0
    %v347 = vsel %vm312, %v345, 0.0
    %v348 = vsel %vm313, %v345, 0.0
    %v349 = vsel %vm314, %v345, 0.0
    %v350 = vsel %vm315, %v345, 0.0
    %v351 = vsel %vm316, %v345, 0.0
    %v352 = vsel %vm317, %v345, 0.0
    %v353 = vsel %vm318, %v345, 0.0
    %v354 = vsel %vm319, %v345, 0.0
    %v355 = vsel %vm320, %v345, 0.0
    %v356 = vsel %vm321, %v345, 0.0
    %v357 = vsel %vm322, %v345, 0.0
    %v358 = vsel %vm323, %v345, 0.0
    %v359 = vsel %vm324, %v345, 0.0
    %v360 = vsel %vm325, %v345, 0.0
    %v361 = vsel %vm326, %v345, 0.0
    %v362 = vsel %vm327, %v345, 0.0
    %v363 = vsel %vm328, %v345, 0.0
    %v364 = vsel %vm329, %v345, 0.0
    %v365 = vsel %vm330, %v345, 0.0
    %v366 = vsel %vm331, %v345, 0.0
    %v367 = vsel %vm332, %v345, 0.0
    %v368 = vsel %vm333, %v345, 0.0
    %v369 = vsel %vm334, %v345, 0.0
    %v370 = vsel %vm335, %v345, 0.0
    %v371 = vsel %vm336, %v345, 0.0
    %v372 = vsel %vm337, %v345, 0.0
    %v373 = vsel %vm338, %v345, 0.0
    %v374 = vsel %vm339, %v345, 0.0
    %v375 = vsel %vm340, %v345, 0.0
    %v376 = vsel %vm341, %v345, 0.0
    %v377 = vadd.f32 %v200, %v346
    %v378 = vadd.f32 %v201, %v347
    %v379 = vadd.f32 %v202, %v348
    %v380 = vadd.f32 %v203, %v349
    %v381 = vadd.f32 %v204, %v350
    %v382 = vadd.f32 %v205, %v351
    %v383 = vadd.f32 %v206, %v352
    %v384 = vadd.f32 %v207, %v353
    %v385 = vadd.f32 %v208, %v354
    %v386 = vadd.f32 %v209, %v355
    %v387 = vadd.f32 %v210, %v356
    %v388 = vadd.f32 %v211, %v357
    %v389 = vadd.f32 %v212, %v358
    %v390 = vadd.f32 %v213, %v359
    %v391 = vadd.f32 %v214, %v360
    %v392 = vadd.f32 %v215, %v361
    %v393 = vadd.f32 %v216, %v362
    %v394 = vadd.f32 %v217, %v363
    %v395 = vadd.f32 %v218, %v364
    %v396 = vadd.f32 %v219, %v365
    %v397 = vadd.f32 %v220, %v366
    %v398 = vadd.f32 %v221, %v367
    %v399 = vadd.f32 %v222, %v368
    %v400 = vadd.f32 %v223, %v369
    %v401 = vadd.f32 %v224, %v370
    %v402 = vadd.f32 %v225, %v371
    %v403 = vadd.f32 %v226, %v372
    %v404 = vadd.f32 %v227, %v373
    %v405 = vadd.f32 %v228, %v374
    %v406 = vadd.f32 %v229, %v375
    %v407 = vadd.f32 %v230, %v376
    %s408 = smul.u32 0, 224
    %v409 = vstv %s408
    %v410 = vadd.s32 %v54, %v409
    %v411 = vadd.s32 %v55, %v409
    %v412 = vadd.s32 %v56, %v409
    %v413 = vadd.s32 %v57, %v409
    %v414 = vadd.s32 %v58, %v409
    %v415 = vadd.s32 %v59, %v409
    %v416 = vadd.s32 %v60, %v409
    %v417 = vadd.s32 %v61, %v409
    %v418 = vadd.s32 %v62, %v409
    %v419 = vadd.s32 %v63, %v409
    %v420 = vadd.s32 %v64, %v409
    %v421 = vadd.s32 %v65, %v409
    %v422 = vadd.s32 %v66, %v409
    %v423 = vadd.s32 %v67, %v409
    %v424 = vadd.s32 %v68, %v409
    %v425 = vadd.s32 %v69, %v409
    %v426 = vadd.s32 %v70, %v409
    %v427 = vadd.s32 %v71, %v409
    %v428 = vadd.s32 %v72, %v409
    %v429 = vadd.s32 %v73, %v409
    %v430 = vadd.s32 %v74, %v409
    %v431 = vadd.s32 %v75, %v409
    %v432 = vadd.s32 %v76, %v409
    %v433 = vadd.s32 %v77, %v409
    %v434 = vadd.s32 %v78, %v409
    %v435 = vadd.s32 %v79, %v409
    %v436 = vadd.s32 %v80, %v409
    %v437 = vadd.s32 %v81, %v409
    %v438 = vlaneseq
    %v439 = vshrl.u32 %v438, 7
    %v440 = vsub.s32 1, %v439
    %v441 = vrot.slane %v46, %v440
    %vm442 = vcmp.eq.s32.totalorder %v410, %v441
    %vm443 = vcmp.eq.s32.totalorder %v411, %v441
    %vm444 = vcmp.eq.s32.totalorder %v412, %v441
    %vm445 = vcmp.eq.s32.totalorder %v413, %v441
    %vm446 = vcmp.eq.s32.totalorder %v414, %v441
    %vm447 = vcmp.eq.s32.totalorder %v415, %v441
    %vm448 = vcmp.eq.s32.totalorder %v416, %v441
    %vm449 = vcmp.eq.s32.totalorder %v417, %v441
    %vm450 = vcmp.eq.s32.totalorder %v418, %v441
    %vm451 = vcmp.eq.s32.totalorder %v419, %v441
    %vm452 = vcmp.eq.s32.totalorder %v420, %v441
    %vm453 = vcmp.eq.s32.totalorder %v421, %v441
    %vm454 = vcmp.eq.s32.totalorder %v422, %v441
    %vm455 = vcmp.eq.s32.totalorder %v423, %v441
    %vm456 = vcmp.eq.s32.totalorder %v424, %v441
    %vm457 = vcmp.eq.s32.totalorder %v425, %v441
    %vm458 = vcmp.eq.s32.totalorder %v426, %v441
    %vm459 = vcmp.eq.s32.totalorder %v427, %v441
    %vm460 = vcmp.eq.s32.totalorder %v428, %v441
    %vm461 = vcmp.eq.s32.totalorder %v429, %v441
    %vm462 = vcmp.eq.s32.totalorder %v430, %v441
    %vm463 = vcmp.eq.s32.totalorder %v431, %v441
    %vm464 = vcmp.eq.s32.totalorder %v432, %v441
    %vm465 = vcmp.eq.s32.totalorder %v433, %v441
    %vm466 = vcmp.eq.s32.totalorder %v434, %v441
    %vm467 = vcmp.eq.s32.totalorder %v435, %v441
    %vm468 = vcmp.eq.s32.totalorder %v436, %v441
    %vm469 = vcmp.eq.s32.totalorder %v437, %v441
    %vm470 = vcmp.ge.s32.totalorder %v46, 0
    %v471 = vsel %vm470, 1, 0
    %v472 = vlaneseq
    %v473 = vshrl.u32 %v472, 7
    %v474 = vsub.s32 1, %v473
    %v475 = vrot.slane %v471, %v474
    %vm476 = vcmp.eq.s32.totalorder %v475, 1
    %vm477 = vmand %vm442, %vm476
    %vm478 = vmand %vm443, %vm476
    %vm479 = vmand %vm444, %vm476
    %vm480 = vmand %vm445, %vm476
    %vm481 = vmand %vm446, %vm476
    %vm482 = vmand %vm447, %vm476
    %vm483 = vmand %vm448, %vm476
    %vm484 = vmand %vm449, %vm476
    %vm485 = vmand %vm450, %vm476
    %vm486 = vmand %vm451, %vm476
    %vm487 = vmand %vm452, %vm476
    %vm488 = vmand %vm453, %vm476
    %vm489 = vmand %vm454, %vm476
    %vm490 = vmand %vm455, %vm476
    %vm491 = vmand %vm456, %vm476
    %vm492 = vmand %vm457, %vm476
    %vm493 = vmand %vm458, %vm476
    %vm494 = vmand %vm459, %vm476
    %vm495 = vmand %vm460, %vm476
    %vm496 = vmand %vm461, %vm476
    %vm497 = vmand %vm462, %vm476
    %vm498 = vmand %vm463, %vm476
    %vm499 = vmand %vm464, %vm476
    %vm500 = vmand %vm465, %vm476
    %vm501 = vmand %vm466, %vm476
    %vm502 = vmand %vm467, %vm476
    %vm503 = vmand %vm468, %vm476
    %vm504 = vmand %vm469, %vm476
    %vm505 = vcmp.lt.s32.totalorder %v46, 224
    %v506 = vsel %vm505, 1, 0
    %v507 = vlaneseq
    %v508 = vshrl.u32 %v507, 7
    %v509 = vsub.s32 1, %v508
    %v510 = vrot.slane %v506, %v509
    %vm511 = vcmp.eq.s32.totalorder %v510, 1
    %vm512 = vmand %vm477, %vm511
    %vm513 = vmand %vm478, %vm511
    %vm514 = vmand %vm479, %vm511
    %vm515 = vmand %vm480, %vm511
    %vm516 = vmand %vm481, %vm511
    %vm517 = vmand %vm482, %vm511
    %vm518 = vmand %vm483, %vm511
    %vm519 = vmand %vm484, %vm511
    %vm520 = vmand %vm485, %vm511
    %vm521 = vmand %vm486, %vm511
    %vm522 = vmand %vm487, %vm511
    %vm523 = vmand %vm488, %vm511
    %vm524 = vmand %vm489, %vm511
    %vm525 = vmand %vm490, %vm511
    %vm526 = vmand %vm491, %vm511
    %vm527 = vmand %vm492, %vm511
    %vm528 = vmand %vm493, %vm511
    %vm529 = vmand %vm494, %vm511
    %vm530 = vmand %vm495, %vm511
    %vm531 = vmand %vm496, %vm511
    %vm532 = vmand %vm497, %vm511
    %vm533 = vmand %vm498, %vm511
    %vm534 = vmand %vm499, %vm511
    %vm535 = vmand %vm500, %vm511
    %vm536 = vmand %vm501, %vm511
    %vm537 = vmand %vm502, %vm511
    %vm538 = vmand %vm503, %vm511
    %vm539 = vmand %vm504, %vm511
    %v540 = vlaneseq
    %v541 = vshrl.u32 %v540, 7
    %v542 = vsub.s32 1, %v541
    %v543 = vrot.slane %v52, %v542
    %v544 = vsel %vm512, %v543, 0.0
    %v545 = vsel %vm513, %v543, 0.0
    %v546 = vsel %vm514, %v543, 0.0
    %v547 = vsel %vm515, %v543, 0.0
    %v548 = vsel %vm516, %v543, 0.0
    %v549 = vsel %vm517, %v543, 0.0
    %v550 = vsel %vm518, %v543, 0.0
    %v551 = vsel %vm519, %v543, 0.0
    %v552 = vsel %vm520, %v543, 0.0
    %v553 = vsel %vm521, %v543, 0.0
    %v554 = vsel %vm522, %v543, 0.0
    %v555 = vsel %vm523, %v543, 0.0
    %v556 = vsel %vm524, %v543, 0.0
    %v557 = vsel %vm525, %v543, 0.0
    %v558 = vsel %vm526, %v543, 0.0
    %v559 = vsel %vm527, %v543, 0.0
    %v560 = vsel %vm528, %v543, 0.0
    %v561 = vsel %vm529, %v543, 0.0
    %v562 = vsel %vm530, %v543, 0.0
    %v563 = vsel %vm531, %v543, 0.0
    %v564 = vsel %vm532, %v543, 0.0
    %v565 = vsel %vm533, %v543, 0.0
    %v566 = vsel %vm534, %v543, 0.0
    %v567 = vsel %vm535, %v543, 0.0
    %v568 = vsel %vm536, %v543, 0.0
    %v569 = vsel %vm537, %v543, 0.0
    %v570 = vsel %vm538, %v543, 0.0
    %v571 = vsel %vm539, %v543, 0.0
    %v572 = vlaneseq
    %v573 = vshrl.u32 %v572, 7
    %v574 = vsub.s32 1, %v573
    %v575 = vrot.slane %v48, %v574
    %vm576 = vcmp.eq.s32.totalorder %v410, %v575
    %vm577 = vcmp.eq.s32.totalorder %v411, %v575
    %vm578 = vcmp.eq.s32.totalorder %v412, %v575
    %vm579 = vcmp.eq.s32.totalorder %v413, %v575
    %vm580 = vcmp.eq.s32.totalorder %v414, %v575
    %vm581 = vcmp.eq.s32.totalorder %v415, %v575
    %vm582 = vcmp.eq.s32.totalorder %v416, %v575
    %vm583 = vcmp.eq.s32.totalorder %v417, %v575
    %vm584 = vcmp.eq.s32.totalorder %v418, %v575
    %vm585 = vcmp.eq.s32.totalorder %v419, %v575
    %vm586 = vcmp.eq.s32.totalorder %v420, %v575
    %vm587 = vcmp.eq.s32.totalorder %v421, %v575
    %vm588 = vcmp.eq.s32.totalorder %v422, %v575
    %vm589 = vcmp.eq.s32.totalorder %v423, %v575
    %vm590 = vcmp.eq.s32.totalorder %v424, %v575
    %vm591 = vcmp.eq.s32.totalorder %v425, %v575
    %vm592 = vcmp.eq.s32.totalorder %v426, %v575
    %vm593 = vcmp.eq.s32.totalorder %v427, %v575
    %vm594 = vcmp.eq.s32.totalorder %v428, %v575
    %vm595 = vcmp.eq.s32.totalorder %v429, %v575
    %vm596 = vcmp.eq.s32.totalorder %v430, %v575
    %vm597 = vcmp.eq.s32.totalorder %v431, %v575
    %vm598 = vcmp.eq.s32.totalorder %v432, %v575
    %vm599 = vcmp.eq.s32.totalorder %v433, %v575
    %vm600 = vcmp.eq.s32.totalorder %v434, %v575
    %vm601 = vcmp.eq.s32.totalorder %v435, %v575
    %vm602 = vcmp.eq.s32.totalorder %v436, %v575
    %vm603 = vcmp.eq.s32.totalorder %v437, %v575
    %vm604 = vcmp.ge.s32.totalorder %v48, 0
    %v605 = vsel %vm604, 1, 0
    %v606 = vlaneseq
    %v607 = vshrl.u32 %v606, 7
    %v608 = vsub.s32 1, %v607
    %v609 = vrot.slane %v605, %v608
    %vm610 = vcmp.eq.s32.totalorder %v609, 1
    %vm611 = vmand %vm576, %vm610
    %vm612 = vmand %vm577, %vm610
    %vm613 = vmand %vm578, %vm610
    %vm614 = vmand %vm579, %vm610
    %vm615 = vmand %vm580, %vm610
    %vm616 = vmand %vm581, %vm610
    %vm617 = vmand %vm582, %vm610
    %vm618 = vmand %vm583, %vm610
    %vm619 = vmand %vm584, %vm610
    %vm620 = vmand %vm585, %vm610
    %vm621 = vmand %vm586, %vm610
    %vm622 = vmand %vm587, %vm610
    %vm623 = vmand %vm588, %vm610
    %vm624 = vmand %vm589, %vm610
    %vm625 = vmand %vm590, %vm610
    %vm626 = vmand %vm591, %vm610
    %vm627 = vmand %vm592, %vm610
    %vm628 = vmand %vm593, %vm610
    %vm629 = vmand %vm594, %vm610
    %vm630 = vmand %vm595, %vm610
    %vm631 = vmand %vm596, %vm610
    %vm632 = vmand %vm597, %vm610
    %vm633 = vmand %vm598, %vm610
    %vm634 = vmand %vm599, %vm610
    %vm635 = vmand %vm600, %vm610
    %vm636 = vmand %vm601, %vm610
    %vm637 = vmand %vm602, %vm610
    %vm638 = vmand %vm603, %vm610
    %vm639 = vcmp.lt.s32.totalorder %v48, 224
    %v640 = vsel %vm639, 1, 0
    %v641 = vlaneseq
    %v642 = vshrl.u32 %v641, 7
    %v643 = vsub.s32 1, %v642
    %v644 = vrot.slane %v640, %v643
    %vm645 = vcmp.eq.s32.totalorder %v644, 1
    %vm646 = vmand %vm611, %vm645
    %vm647 = vmand %vm612, %vm645
    %vm648 = vmand %vm613, %vm645
    %vm649 = vmand %vm614, %vm645
    %vm650 = vmand %vm615, %vm645
    %vm651 = vmand %vm616, %vm645
    %vm652 = vmand %vm617, %vm645
    %vm653 = vmand %vm618, %vm645
    %vm654 = vmand %vm619, %vm645
    %vm655 = vmand %vm620, %vm645
    %vm656 = vmand %vm621, %vm645
    %vm657 = vmand %vm622, %vm645
    %vm658 = vmand %vm623, %vm645
    %vm659 = vmand %vm624, %vm645
    %vm660 = vmand %vm625, %vm645
    %vm661 = vmand %vm626, %vm645
    %vm662 = vmand %vm627, %vm645
    %vm663 = vmand %vm628, %vm645
    %vm664 = vmand %vm629, %vm645
    %vm665 = vmand %vm630, %vm645
    %vm666 = vmand %vm631, %vm645
    %vm667 = vmand %vm632, %vm645
    %vm668 = vmand %vm633, %vm645
    %vm669 = vmand %vm634, %vm645
    %vm670 = vmand %vm635, %vm645
    %vm671 = vmand %vm636, %vm645
    %vm672 = vmand %vm637, %vm645
    %vm673 = vmand %vm638, %vm645
    %v674 = vlaneseq
    %v675 = vshrl.u32 %v674, 7
    %v676 = vsub.s32 1, %v675
    %v677 = vrot.slane %v51, %v676
    %v678 = vsel %vm646, %v677, 0.0
    %v679 = vsel %vm647, %v677, 0.0
    %v680 = vsel %vm648, %v677, 0.0
    %v681 = vsel %vm649, %v677, 0.0
    %v682 = vsel %vm650, %v677, 0.0
    %v683 = vsel %vm651, %v677, 0.0
    %v684 = vsel %vm652, %v677, 0.0
    %v685 = vsel %vm653, %v677, 0.0
    %v686 = vsel %vm654, %v677, 0.0
    %v687 = vsel %vm655, %v677, 0.0
    %v688 = vsel %vm656, %v677, 0.0
    %v689 = vsel %vm657, %v677, 0.0
    %v690 = vsel %vm658, %v677, 0.0
    %v691 = vsel %vm659, %v677, 0.0
    %v692 = vsel %vm660, %v677, 0.0
    %v693 = vsel %vm661, %v677, 0.0
    %v694 = vsel %vm662, %v677, 0.0
    %v695 = vsel %vm663, %v677, 0.0
    %v696 = vsel %vm664, %v677, 0.0
    %v697 = vsel %vm665, %v677, 0.0
    %v698 = vsel %vm666, %v677, 0.0
    %v699 = vsel %vm667, %v677, 0.0
    %v700 = vsel %vm668, %v677, 0.0
    %v701 = vsel %vm669, %v677, 0.0
    %v702 = vsel %vm670, %v677, 0.0
    %v703 = vsel %vm671, %v677, 0.0
    %v704 = vsel %vm672, %v677, 0.0
    %v705 = vsel %vm673, %v677, 0.0
    %v706 = vadd.f32 %v544, %v678
    %v707 = vadd.f32 %v545, %v679
    %v708 = vadd.f32 %v546, %v680
    %v709 = vadd.f32 %v547, %v681
    %v710 = vadd.f32 %v548, %v682
    %v711 = vadd.f32 %v549, %v683
    %v712 = vadd.f32 %v550, %v684
    %v713 = vadd.f32 %v551, %v685
    %v714 = vadd.f32 %v552, %v686
    %v715 = vadd.f32 %v553, %v687
    %v716 = vadd.f32 %v554, %v688
    %v717 = vadd.f32 %v555, %v689
    %v718 = vadd.f32 %v556, %v690
    %v719 = vadd.f32 %v557, %v691
    %v720 = vadd.f32 %v558, %v692
    %v721 = vadd.f32 %v559, %v693
    %v722 = vadd.f32 %v560, %v694
    %v723 = vadd.f32 %v561, %v695
    %v724 = vadd.f32 %v562, %v696
    %v725 = vadd.f32 %v563, %v697
    %v726 = vadd.f32 %v564, %v698
    %v727 = vadd.f32 %v565, %v699
    %v728 = vadd.f32 %v566, %v700
    %v729 = vadd.f32 %v567, %v701
    %v730 = vadd.f32 %v568, %v702
    %v731 = vadd.f32 %v569, %v703
    %v732 = vadd.f32 %v570, %v704
    %v733 = vadd.f32 %v571, %v705
    %p734 = scmp.eq.s32.totalorder 0, 0
    // Predicated region
    $region18: #{tpu_custom_call.1} parent=1 // pred_check
      %p735 = pneg %p734
    $region19: #{tpu_custom_call.1} parent=1 // pred_check_branch
      %737 = sbr.rel (%p735) target = $region21
    $region20: #{tpu_custom_call.1} parent=1 // pred_region
      %vm738 = vcmask 123904
      %739 = vst.msk [vmem:[#allocation2] sm:$0x3] %vm738, 0.0
    $region21: #{tpu_custom_call.1} parent=1 // pred_fallthru
      _
    %v740 = vld [vmem:[#allocation6] sm:$0xff]
    %v741 = vld [vmem:[#allocation6 + $0x8] sm:$0xff]
    %v742 = vld [vmem:[#allocation6 + $0x10] sm:$0xff]
    %v743 = vld [vmem:[#allocation6 + $0x18] sm:$0xff]
    %v744 = vld [vmem:[#allocation6 + $0x20] sm:$0xff]
    %v745 = vld [vmem:[#allocation6 + $0x28] sm:$0xff]
    %v746 = vld [vmem:[#allocation6 + $0x30] sm:$0xff]
    %v747 = vld [vmem:[#allocation6 + $0x38] sm:$0xff]
    %v748 = vld [vmem:[#allocation6 + $0x40] sm:$0xff]
    %v749 = vld [vmem:[#allocation6 + $0x48] sm:$0xff]
    %v750 = vld [vmem:[#allocation6 + $0x50] sm:$0xff]
    %v751 = vld [vmem:[#allocation6 + $0x58] sm:$0xff]
    %v752 = vld [vmem:[#allocation6 + $0x60] sm:$0xff]
    %v753 = vld [vmem:[#allocation6 + $0x68] sm:$0xff]
    %v754 = vld [vmem:[#allocation6 + $0x70] sm:$0xff]
    %v755 = vld [vmem:[#allocation6 + $0x78] sm:$0xff]
    %v756 = vld [vmem:[#allocation6 + $0x80] sm:$0xff]
    %v757 = vld [vmem:[#allocation6 + $0x88] sm:$0xff]
    %v758 = vld [vmem:[#allocation6 + $0x90] sm:$0xff]
    %v759 = vld [vmem:[#allocation6 + $0x98] sm:$0xff]
    %v760 = vld [vmem:[#allocation6 + $0xa0] sm:$0xff]
    %v761 = vld [vmem:[#allocation6 + $0xa8] sm:$0xff]
    %v762 = vld [vmem:[#allocation6 + $0xb0] sm:$0xff]
    %v763 = vld [vmem:[#allocation6 + $0xb8] sm:$0xff]
    %v764 = vld [vmem:[#allocation6 + $0xc0] sm:$0xff]
    %v765 = vld [vmem:[#allocation6 + $0xc8] sm:$0xff]
    %v766 = vld [vmem:[#allocation6 + $0xd0] sm:$0xff]
    %v767 = vld [vmem:[#allocation6 + $0xd8] sm:$0xff]
    %v768 = vld [vmem:[#allocation6 + $0xe0] sm:$0xff]
    %v769 = vld [vmem:[#allocation6 + $0xe8] sm:$0xff]
    %v770 = vld [vmem:[#allocation6 + $0xf0] sm:$0xff]
    %v771 = vld [vmem:[#allocation6 + $0xf8] sm:$0xff]
    %v772 = vld [vmem:[#allocation6 + $0x100] sm:$0xff]
    %v773 = vld [vmem:[#allocation6 + $0x108] sm:$0xff]
    %v774 = vld [vmem:[#allocation6 + $0x110] sm:$0xff]
    %v775 = vld [vmem:[#allocation6 + $0x118] sm:$0xff]
    %v776 = vld [vmem:[#allocation6 + $0x120] sm:$0xff]
    %v777 = vld [vmem:[#allocation6 + $0x128] sm:$0xff]
    %v778 = vld [vmem:[#allocation6 + $0x130] sm:$0xff]
    %v779 = vld [vmem:[#allocation6 + $0x138] sm:$0xff]
    %v780 = vld [vmem:[#allocation6 + $0x140] sm:$0xff]
    %v781 = vld [vmem:[#allocation6 + $0x148] sm:$0xff]
    %v782 = vld [vmem:[#allocation6 + $0x150] sm:$0xff]
    %v783 = vld [vmem:[#allocation6 + $0x158] sm:$0xff]
    %v784 = vld [vmem:[#allocation6 + $0x160] sm:$0xff]
    %v785 = vld [vmem:[#allocation6 + $0x168] sm:$0xff]
    %v786 = vld [vmem:[#allocation6 + $0x170] sm:$0xff]
    %v787 = vld [vmem:[#allocation6 + $0x178] sm:$0xff]
    %v788 = vld [vmem:[#allocation6 + $0x180] sm:$0xff]
    %v789 = vld [vmem:[#allocation6 + $0x188] sm:$0xff]
    %v790 = vld [vmem:[#allocation6 + $0x190] sm:$0xff]
    %v791 = vld [vmem:[#allocation6 + $0x198] sm:$0xff]
    %v792 = vld [vmem:[#allocation6 + $0x1a0] sm:$0xff]
    %v793 = vld [vmem:[#allocation6 + $0x1a8] sm:$0xff]
    %v794 = vld [vmem:[#allocation6 + $0x1b0] sm:$0xff]
    %v795 = vld [vmem:[#allocation6 + $0x1b8] sm:$0xff]
    %vm796 = vcmask 949248
    %v798 = vsel %vm796, %v741, 0
    %v801 = vsel %vm796, %v743, 0
    %v804 = vsel %vm796, %v745, 0
    %v807 = vsel %vm796, %v747, 0
    %v810 = vsel %vm796, %v749, 0
    %v813 = vsel %vm796, %v751, 0
    %v816 = vsel %vm796, %v753, 0
    %v819 = vsel %vm796, %v755, 0
    %v822 = vsel %vm796, %v757, 0
    %v825 = vsel %vm796, %v759, 0
    %v828 = vsel %vm796, %v761, 0
    %v831 = vsel %vm796, %v763, 0
    %v834 = vsel %vm796, %v765, 0
    %v837 = vsel %vm796, %v767, 0
    %v840 = vsel %vm796, %v769, 0
    %v843 = vsel %vm796, %v771, 0
    %v846 = vsel %vm796, %v773, 0
    %v849 = vsel %vm796, %v775, 0
    %v852 = vsel %vm796, %v777, 0
    %v855 = vsel %vm796, %v779, 0
    %v858 = vsel %vm796, %v781, 0
    %v861 = vsel %vm796, %v783, 0
    %v864 = vsel %vm796, %v785, 0
    %v867 = vsel %vm796, %v787, 0
    %v870 = vsel %vm796, %v789, 0
    %v873 = vsel %vm796, %v791, 0
    %v876 = vsel %vm796, %v793, 0
    %v879 = vsel %vm796, %v795, 0
    %vm881 = vcmask 1043456
    %v883 = vsel %vm881, %v407, 0
    %885 = vmatprep.subr.mxu0 0.0
    %886 = vmatpush1.msra.mxu0 %v377
    %887 = vmatprep.subr.mxu0 0.0
    %888 = vmatpush1.msra.mxu0 %v378
    %889 = vmatprep.subr.mxu0 0.0
    %890 = vmatpush1.msra.mxu0 %v379
    %891 = vmatprep.subr.mxu0 0.0
    %892 = vmatpush1.msra.mxu0 %v380
    %893 = vmatprep.subr.mxu0 0.0
    %894 = vmatpush1.msra.mxu0 %v381
    %895 = vmatprep.subr.mxu0 0.0
    %896 = vmatpush1.msra.mxu0 %v382
    %897 = vmatprep.subr.mxu0 0.0
    %898 = vmatpush1.msra.mxu0 %v383
    %899 = vmatprep.subr.mxu0 0.0
    %900 = vmatpush1.msra.mxu0 %v384
    %901 = vmatprep.subr.mxu0 0.0
    %902 = vmatpush1.msra.mxu0 %v385
    %903 = vmatprep.subr.mxu0 0.0
    %904 = vmatpush1.msra.mxu0 %v386
    %905 = vmatprep.subr.mxu0 0.0
    %906 = vmatpush1.msra.mxu0 %v387
    %907 = vmatprep.subr.mxu0 0.0
    %908 = vmatpush1.msra.mxu0 %v388
    %909 = vmatprep.subr.mxu0 0.0
    %910 = vmatpush1.msra.mxu0 %v389
    %911 = vmatprep.subr.mxu0 0.0
    %912 = vmatpush1.msra.mxu0 %v390
    %913 = vmatprep.subr.mxu0 0.0
    %914 = vmatpush1.msra.mxu0 %v391
    %915 = vmatprep.subr.mxu0 0.0
    %916 = vmatpush1.msra.mxu0 %v392
    %917 = vmatprep.subr.mxu0 0.0
    %918 = vmatpush1.msra.mxu0 %v393
    %919 = vmatprep.subr.mxu0 0.0
    %920 = vmatpush1.msra.mxu0 %v394
    %921 = vmatprep.subr.mxu0 0.0
    %922 = vmatpush1.msra.mxu0 %v395
    %923 = vmatprep.subr.mxu0 0.0
    %924 = vmatpush1.msra.mxu0 %v396
    %925 = vmatprep.subr.mxu0 0.0
    %926 = vmatpush1.msra.mxu0 %v397
    %927 = vmatprep.subr.mxu0 0.0
    %928 = vmatpush1.msra.mxu0 %v398
    %929 = vmatprep.subr.mxu0 0.0
    %930 = vmatpush1.msra.mxu0 %v399
    %931 = vmatprep.subr.mxu0 0.0
    %932 = vmatpush1.msra.mxu0 %v400
    %933 = vmatprep.subr.mxu0 0.0
    %934 = vmatpush1.msra.mxu0 %v401
    %935 = vmatprep.subr.mxu0 0.0
    %936 = vmatpush1.msra.mxu0 %v402
    %937 = vmatprep.subr.mxu0 0.0
    %938 = vmatpush1.msra.mxu0 %v403
    %939 = vmatprep.subr.mxu0 0.0
    %940 = vmatpush1.msra.mxu0 %v404
    %941 = vmatprep.subr.mxu0 0.0
    %942 = vmatpush1.msra.mxu0 %v405
    %943 = vmatprep.subr.mxu0 0.0
    %944 = vmatpush1.msra.mxu0 %v406
    %945 = vmatprep.subr.mxu0 0.0
    %946 = vmatpush1.msra.mxu0 %v883
    %947 = vmatprep.subr.mxu0 0.0
    %948 = vmatpush1.msra.mxu0 0.0
    %949 = vmatprep.mubr.f32.mxu0 %v798
    %950 = vmatmul.mubr.f32.gmra.mrb[0].mxu0 %v740
    %v951 = vpop.f32.mrb[0].mxu0
    %v952 = vadd.f32 0.0, %v951
    %v953 = vpop.f32.mrb[0].mxu0
    %954 = vmatprep.mubr.f32.mxu0 %v801
    %955 = vmatmul.mubr.f32.gmra.mrb[0].mxu0 %v742
    %v956 = vpop.f32.mrb[0].mxu0
    %v957 = vadd.f32 0.0, %v956
    %v958 = vpop.f32.mrb[0].mxu0
    %959 = vmatprep.mubr.f32.mxu0 %v804
    %960 = vmatmul.mubr.f32.gmra.mrb[0].mxu0 %v744
    %v961 = vpop.f32.mrb[0].mxu0
    %v962 = vadd.f32 0.0, %v961
    %v963 = vpop.f32.mrb[0].mxu0
    %964 = vmatprep.mubr.f32.mxu0 %v807
    %965 = vmatmul.mubr.f32.gmra.mrb[0].mxu0 %v746
    %v966 = vpop.f32.mrb[0].mxu0
    %v967 = vadd.f32 0.0, %v966
    %v968 = vpop.f32.mrb[0].mxu0
    %969 = vmatprep.mubr.f32.mxu0 %v810
    %970 = vmatmul.mubr.f32.gmra.mrb[0].mxu0 %v748
    %v971 = vpop.f32.mrb[0].mxu0
    %v972 = vadd.f32 0.0, %v971
    %v973 = vpop.f32.mrb[0].mxu0
    %974 = vmatprep.mubr.f32.mxu0 %v813
    %975 = vmatmul.mubr.f32.gmra.mrb[0].mxu0 %v750
    %v976 = vpop.f32.mrb[0].mxu0
    %v977 = vadd.f32 0.0, %v976
    %v978 = vpop.f32.mrb[0].mxu0
    %979 = vmatprep.mubr.f32.mxu0 %v816
    %980 = vmatmul.mubr.f32.gmra.mrb[0].mxu0 %v752
    %v981 = vpop.f32.mrb[0].mxu0
    %v982 = vadd.f32 0.0, %v981
    %v983 = vpop.f32.mrb[0].mxu0
    %984 = vmatprep.mubr.f32.mxu0 %v819
    %985 = vmatmul.mubr.f32.gmra.mrb[0].mxu0 %v754
    %v986 = vpop.f32.mrb[0].mxu0
    %v987 = vadd.f32 0.0, %v986
    %v988 = vpop.f32.mrb[0].mxu0
    %989 = vmatprep.mubr.f32.mxu0 %v822
    %990 = vmatmul.mubr.f32.gmra.mrb[0].mxu0 %v756
    %v991 = vpop.f32.mrb[0].mxu0
    %v992 = vadd.f32 0.0, %v991
    %v993 = vpop.f32.mrb[0].mxu0
    %994 = vmatprep.mubr.f32.mxu0 %v825
    %995 = vmatmul.mubr.f32.gmra.mrb[0].mxu0 %v758
    %v996 = vpop.f32.mrb[0].mxu0
    %v997 = vadd.f32 0.0, %v996
    %v998 = vpop.f32.mrb[0].mxu0
    %999 = vmatprep.mubr.f32.mxu0 %v828
    %1000 = vmatmul.mubr.f32.gmra.mrb[0].mxu0 %v760
    %v1001 = vpop.f32.mrb[0].mxu0
    %v1002 = vadd.f32 0.0, %v1001
    %v1003 = vpop.f32.mrb[0].mxu0
    %1004 = vmatprep.mubr.f32.mxu0 %v831
    %1005 = vmatmul.mubr.f32.gmra.mrb[0].mxu0 %v762
    %v1006 = vpop.f32.mrb[0].mxu0
    %v1007 = vadd.f32 0.0, %v1006
    %v1008 = vpop.f32.mrb[0].mxu0
    %1009 = vmatprep.mubr.f32.mxu0 %v834
    %1010 = vmatmul.mubr.f32.gmra.mrb[0].mxu0 %v764
    %v1011 = vpop.f32.mrb[0].mxu0
    %v1012 = vadd.f32 0.0, %v1011
    %v1013 = vpop.f32.mrb[0].mxu0
    %1014 = vmatprep.mubr.f32.mxu0 %v837
    %1015 = vmatmul.mubr.f32.gmra.mrb[0].mxu0 %v766
    %v1016 = vpop.f32.mrb[0].mxu0
    %v1017 = vadd.f32 0.0, %v1016
    %v1018 = vpop.f32.mrb[0].mxu0
    %1019 = vmatprep.mubr.f32.mxu0 %v840
    %1020 = vmatmul.mubr.f32.gmra.mrb[0].mxu0 %v768
    %v1021 = vpop.f32.mrb[0].mxu0
    %v1022 = vadd.f32 0.0, %v1021
    %v1023 = vpop.f32.mrb[0].mxu0
    %1024 = vmatprep.mubr.f32.mxu0 %v843
    %1025 = vmatmul.mubr.f32.gmra.mrb[0].mxu0 %v770
    %v1026 = vpop.f32.mrb[0].mxu0
    %v1027 = vadd.f32 0.0, %v1026
    %v1028 = vpop.f32.mrb[0].mxu0
    %1029 = vmatprep.mubr.f32.mxu0 %v846
    %1030 = vmatmul.mubr.f32.gmra.mrb[0].mxu0 %v772
    %v1031 = vpop.f32.mrb[0].mxu0
    %v1032 = vadd.f32 0.0, %v1031
    %v1033 = vpop.f32.mrb[0].mxu0
    %1034 = vmatprep.mubr.f32.mxu0 %v849
    %1035 = vmatmul.mubr.f32.gmra.mrb[0].mxu0 %v774
    %v1036 = vpop.f32.mrb[0].mxu0
    %v1037 = vadd.f32 0.0, %v1036
    %v1038 = vpop.f32.mrb[0].mxu0
    %1039 = vmatprep.mubr.f32.mxu0 %v852
    %1040 = vmatmul.mubr.f32.gmra.mrb[0].mxu0 %v776
    %v1041 = vpop.f32.mrb[0].mxu0
    %v1042 = vadd.f32 0.0, %v1041
    %v1043 = vpop.f32.mrb[0].mxu0
    %1044 = vmatprep.mubr.f32.mxu0 %v855
    %1045 = vmatmul.mubr.f32.gmra.mrb[0].mxu0 %v778
    %v1046 = vpop.f32.mrb[0].mxu0
    %v1047 = vadd.f32 0.0, %v1046
    %v1048 = vpop.f32.mrb[0].mxu0
    %1049 = vmatprep.mubr.f32.mxu0 %v858
    %1050 = vmatmul.mubr.f32.gmra.mrb[0].mxu0 %v780
    %v1051 = vpop.f32.mrb[0].mxu0
    %v1052 = vadd.f32 0.0, %v1051
    %v1053 = vpop.f32.mrb[0].mxu0
    %1054 = vmatprep.mubr.f32.mxu0 %v861
    %1055 = vmatmul.mubr.f32.gmra.mrb[0].mxu0 %v782
    %v1056 = vpop.f32.mrb[0].mxu0
    %v1057 = vadd.f32 0.0, %v1056
    %v1058 = vpop.f32.mrb[0].mxu0
    %1059 = vmatprep.mubr.f32.mxu0 %v864
    %1060 = vmatmul.mubr.f32.gmra.mrb[0].mxu0 %v784
    %v1061 = vpop.f32.mrb[0].mxu0
    %v1062 = vadd.f32 0.0, %v1061
    %v1063 = vpop.f32.mrb[0].mxu0
    %1064 = vmatprep.mubr.f32.mxu0 %v867
    %1065 = vmatmul.mubr.f32.gmra.mrb[0].mxu0 %v786
    %v1066 = vpop.f32.mrb[0].mxu0
    %v1067 = vadd.f32 0.0, %v1066
    %v1068 = vpop.f32.mrb[0].mxu0
    %1069 = vmatprep.mubr.f32.mxu0 %v870
    %1070 = vmatmul.mubr.f32.gmra.mrb[0].mxu0 %v788
    %v1071 = vpop.f32.mrb[0].mxu0
    %v1072 = vadd.f32 0.0, %v1071
    %v1073 = vpop.f32.mrb[0].mxu0
    %1074 = vmatprep.mubr.f32.mxu0 %v873
    %1075 = vmatmul.mubr.f32.gmra.mrb[0].mxu0 %v790
    %v1076 = vpop.f32.mrb[0].mxu0
    %v1077 = vadd.f32 0.0, %v1076
    %v1078 = vpop.f32.mrb[0].mxu0
    %1079 = vmatprep.mubr.f32.mxu0 %v876
    %1080 = vmatmul.mubr.f32.gmra.mrb[0].mxu0 %v792
    %v1081 = vpop.f32.mrb[0].mxu0
    %v1082 = vadd.f32 0.0, %v1081
    %v1083 = vpop.f32.mrb[0].mxu0
    %1084 = vmatprep.mubr.f32.mxu0 %v879
    %1085 = vmatmul.mubr.f32.gmra.mrb[0].mxu0 %v794
    %v1086 = vpop.f32.mrb[0].mxu0
    %v1087 = vadd.f32 0.0, %v1086
    %v1088 = vpop.f32.mrb[0].mxu0
    %1089 = vdwg.mxu0
    %v1090 = vmul.f32 %v952, %v706
    %v1091 = vmul.f32 %v957, %v707
    %v1092 = vmul.f32 %v962, %v708
    %v1093 = vmul.f32 %v967, %v709
    %v1094 = vmul.f32 %v972, %v710
    %v1095 = vmul.f32 %v977, %v711
    %v1096 = vmul.f32 %v982, %v712
    %v1097 = vmul.f32 %v987, %v713
    %v1098 = vmul.f32 %v992, %v714
    %v1099 = vmul.f32 %v997, %v715
    %v1100 = vmul.f32 %v1002, %v716
    %v1101 = vmul.f32 %v1007, %v717
    %v1102 = vmul.f32 %v1012, %v718
    %v1103 = vmul.f32 %v1017, %v719
    %v1104 = vmul.f32 %v1022, %v720
    %v1105 = vmul.f32 %v1027, %v721
    %v1106 = vmul.f32 %v1032, %v722
    %v1107 = vmul.f32 %v1037, %v723
    %v1108 = vmul.f32 %v1042, %v724
    %v1109 = vmul.f32 %v1047, %v725
    %v1110 = vmul.f32 %v1052, %v726
    %v1111 = vmul.f32 %v1057, %v727
    %v1112 = vmul.f32 %v1062, %v728
    %v1113 = vmul.f32 %v1067, %v729
    %v1114 = vmul.f32 %v1072, %v730
    %v1115 = vmul.f32 %v1077, %v731
    %v1116 = vmul.f32 %v1082, %v732
    %v1117 = vmul.f32 %v1087, %v733
    %vm1118 = vcmask 130048
    %v1119 = vsel %vm1118, %v1090, 0.0
    %v1120 = vsel %vm1118, %v1091, 0.0
    %v1121 = vadd.f32 %v1119, %v1120
    %v1122 = vsel %vm1118, %v1092, 0.0
    %v1123 = vadd.f32 %v1121, %v1122
    %v1124 = vsel %vm1118, %v1093, 0.0
    %v1125 = vadd.f32 %v1123, %v1124
    %v1126 = vsel %vm1118, %v1094, 0.0
    %v1127 = vadd.f32 %v1125, %v1126
    %v1128 = vsel %vm1118, %v1095, 0.0
    %v1129 = vadd.f32 %v1127, %v1128
    %v1130 = vsel %vm1118, %v1096, 0.0
    %v1131 = vadd.f32 %v1129, %v1130
    %v1132 = vsel %vm1118, %v1097, 0.0
    %v1133 = vadd.f32 %v1131, %v1132
    %v1134 = vsel %vm1118, %v1098, 0.0
    %v1135 = vadd.f32 %v1133, %v1134
    %v1136 = vsel %vm1118, %v1099, 0.0
    %v1137 = vadd.f32 %v1135, %v1136
    %v1138 = vsel %vm1118, %v1100, 0.0
    %v1139 = vadd.f32 %v1137, %v1138
    %v1140 = vsel %vm1118, %v1101, 0.0
    %v1141 = vadd.f32 %v1139, %v1140
    %v1142 = vsel %vm1118, %v1102, 0.0
    %v1143 = vadd.f32 %v1141, %v1142
    %v1144 = vsel %vm1118, %v1103, 0.0
    %v1145 = vadd.f32 %v1143, %v1144
    %v1146 = vsel %vm1118, %v1104, 0.0
    %v1147 = vadd.f32 %v1145, %v1146
    %v1148 = vsel %vm1118, %v1105, 0.0
    %v1149 = vadd.f32 %v1147, %v1148
    %v1150 = vsel %vm1118, %v1106, 0.0
    %v1151 = vadd.f32 %v1149, %v1150
    %v1152 = vsel %vm1118, %v1107, 0.0
    %v1153 = vadd.f32 %v1151, %v1152
    %v1154 = vsel %vm1118, %v1108, 0.0
    %v1155 = vadd.f32 %v1153, %v1154
    %v1156 = vsel %vm1118, %v1109, 0.0
    %v1157 = vadd.f32 %v1155, %v1156
    %v1158 = vsel %vm1118, %v1110, 0.0
    %v1159 = vadd.f32 %v1157, %v1158
    %v1160 = vsel %vm1118, %v1111, 0.0
    %v1161 = vadd.f32 %v1159, %v1160
    %v1162 = vsel %vm1118, %v1112, 0.0
    %v1163 = vadd.f32 %v1161, %v1162
    %v1164 = vsel %vm1118, %v1113, 0.0
    %v1165 = vadd.f32 %v1163, %v1164
    %v1166 = vsel %vm1118, %v1114, 0.0
    %v1167 = vadd.f32 %v1165, %v1166
    %v1168 = vsel %vm1118, %v1115, 0.0
    %v1169 = vadd.f32 %v1167, %v1168
    %v1170 = vsel %vm1118, %v1116, 0.0
    %v1171 = vadd.f32 %v1169, %v1170
    %v1172 = vsel %vm1118, %v1117, 0.0
    %v1173 = vadd.f32 %v1171, %v1172
    %v1174 = vrot.slane %v1173, 4
    %v1175 = vadd.f32 %v1173, %v1174
    %v1176 = vrot.slane %v1175, 2
    %v1177 = vadd.f32 %v1175, %v1176
    %v1178 = vrot.slane %v1177, 1
    %v1179 = vadd.f32 %v1177, %v1178
    %s1180 = scalar_lea.vmem [#allocation6], 448
    %v1181 = vld [vmem:[%s1180] sm:$0xff]
    %v1182 = vld [vmem:[%s1180 + $0x8] sm:$0xff]
    %v1183 = vld [vmem:[%s1180 + $0x10] sm:$0xff]
    %v1184 = vld [vmem:[%s1180 + $0x18] sm:$0xff]
    %v1185 = vld [vmem:[%s1180 + $0x20] sm:$0xff]
    %v1186 = vld [vmem:[%s1180 + $0x28] sm:$0xff]
    %v1187 = vld [vmem:[%s1180 + $0x30] sm:$0xff]
    %v1188 = vld [vmem:[%s1180 + $0x38] sm:$0xff]
    %v1189 = vld [vmem:[%s1180 + $0x40] sm:$0xff]
    %v1190 = vld [vmem:[%s1180 + $0x48] sm:$0xff]
    %v1191 = vld [vmem:[%s1180 + $0x50] sm:$0xff]
    %v1192 = vld [vmem:[%s1180 + $0x58] sm:$0xff]
    %v1193 = vld [vmem:[%s1180 + $0x60] sm:$0xff]
    %v1194 = vld [vmem:[%s1180 + $0x68] sm:$0xff]
    %v1195 = vld [vmem:[%s1180 + $0x70] sm:$0xff]
    %v1196 = vld [vmem:[%s1180 + $0x78] sm:$0xff]
    %v1197 = vld [vmem:[%s1180 + $0x80] sm:$0xff]
    %v1198 = vld [vmem:[%s1180 + $0x88] sm:$0xff]
    %v1199 = vld [vmem:[%s1180 + $0x90] sm:$0xff]
    %v1200 = vld [vmem:[%s1180 + $0x98] sm:$0xff]
    %v1201 = vld [vmem:[%s1180 + $0xa0] sm:$0xff]
    %v1202 = vld [vmem:[%s1180 + $0xa8] sm:$0xff]
    %v1203 = vld [vmem:[%s1180 + $0xb0] sm:$0xff]
    %v1204 = vld [vmem:[%s1180 + $0xb8] sm:$0xff]
    %v1205 = vld [vmem:[%s1180 + $0xc0] sm:$0xff]
    %v1206 = vld [vmem:[%s1180 + $0xc8] sm:$0xff]
    %v1207 = vld [vmem:[%s1180 + $0xd0] sm:$0xff]
    %v1208 = vld [vmem:[%s1180 + $0xd8] sm:$0xff]
    %v1209 = vld [vmem:[%s1180 + $0xe0] sm:$0xff]
    %v1210 = vld [vmem:[%s1180 + $0xe8] sm:$0xff]
    %v1211 = vld [vmem:[%s1180 + $0xf0] sm:$0xff]
    %v1212 = vld [vmem:[%s1180 + $0xf8] sm:$0xff]
    %v1213 = vld [vmem:[%s1180 + $0x100] sm:$0xff]
    %v1214 = vld [vmem:[%s1180 + $0x108] sm:$0xff]
    %v1215 = vld [vmem:[%s1180 + $0x110] sm:$0xff]
    %v1216 = vld [vmem:[%s1180 + $0x118] sm:$0xff]
    %v1217 = vld [vmem:[%s1180 + $0x120] sm:$0xff]
    %v1218 = vld [vmem:[%s1180 + $0x128] sm:$0xff]
    %v1219 = vld [vmem:[%s1180 + $0x130] sm:$0xff]
    %v1220 = vld [vmem:[%s1180 + $0x138] sm:$0xff]
    %v1221 = vld [vmem:[%s1180 + $0x140] sm:$0xff]
    %v1222 = vld [vmem:[%s1180 + $0x148] sm:$0xff]
    %v1223 = vld [vmem:[%s1180 + $0x150] sm:$0xff]
    %v1224 = vld [vmem:[%s1180 + $0x158] sm:$0xff]
    %v1225 = vld [vmem:[%s1180 + $0x160] sm:$0xff]
    %v1226 = vld [vmem:[%s1180 + $0x168] sm:$0xff]
    %v1227 = vld [vmem:[%s1180 + $0x170] sm:$0xff]
    %v1228 = vld [vmem:[%s1180 + $0x178] sm:$0xff]
    %v1229 = vld [vmem:[%s1180 + $0x180] sm:$0xff]
    %v1230 = vld [vmem:[%s1180 + $0x188] sm:$0xff]
    %v1231 = vld [vmem:[%s1180 + $0x190] sm:$0xff]
    %v1232 = vld [vmem:[%s1180 + $0x198] sm:$0xff]
    %v1233 = vld [vmem:[%s1180 + $0x1a0] sm:$0xff]
    %v1234 = vld [vmem:[%s1180 + $0x1a8] sm:$0xff]
    %v1235 = vld [vmem:[%s1180 + $0x1b0] sm:$0xff]
    %v1236 = vld [vmem:[%s1180 + $0x1b8] sm:$0xff]
    %v1238 = vsel %vm796, %v1182, 0
    %v1241 = vsel %vm796, %v1184, 0
    %v1244 = vsel %vm796, %v1186, 0
    %v1247 = vsel %vm796, %v1188, 0
    %v1250 = vsel %vm796, %v1190, 0
    %v1253 = vsel %vm796, %v1192, 0
    %v1256 = vsel %vm796, %v1194, 0
    %v1259 = vsel %vm796, %v1196, 0
    %v1262 = vsel %vm796, %v1198, 0
    %v1265 = vsel %vm796, %v1200, 0
    %v1268 = vsel %vm796, %v1202, 0
    %v1271 = vsel %vm796, %v1204, 0
    %v1274 = vsel %vm796, %v1206, 0
    %v1277 = vsel %vm796, %v1208, 0
    %v1280 = vsel %vm796, %v1210, 0
    %v1283 = vsel %vm796, %v1212, 0
    %v1286 = vsel %vm796, %v1214, 0
    %v1289 = vsel %vm796, %v1216, 0
    %v1292 = vsel %vm796, %v1218, 0
    %v1295 = vsel %vm796, %v1220, 0
    %v1298 = vsel %vm796, %v1222, 0
    %v1301 = vsel %vm796, %v1224, 0
    %v1304 = vsel %vm796, %v1226, 0
    %v1307 = vsel %vm796, %v1228, 0
    %v1310 = vsel %vm796, %v1230, 0
    %v1313 = vsel %vm796, %v1232, 0
    %v1316 = vsel %vm796, %v1234, 0
    %v1319 = vsel %vm796, %v1236, 0
    %1321 = vmatprep.subr.mxu0 0.0
    %1322 = vmatpush1.msra.mxu0 %v377
    %1323 = vmatprep.subr.mxu0 0.0
    %1324 = vmatpush1.msra.mxu0 %v378
    %1325 = vmatprep.subr.mxu0 0.0
    %1326 = vmatpush1.msra.mxu0 %v379
    %1327 = vmatprep.subr.mxu0 0.0
    %1328 = vmatpush1.msra.mxu0 %v380
    %1329 = vmatprep.subr.mxu0 0.0
    %1330 = vmatpush1.msra.mxu0 %v381
    %1331 = vmatprep.subr.mxu0 0.0
    %1332 = vmatpush1.msra.mxu0 %v382
    %1333 = vmatprep.subr.mxu0 0.0
    %1334 = vmatpush1.msra.mxu0 %v383
    %1335 = vmatprep.subr.mxu0 0.0
    %1336 = vmatpush1.msra.mxu0 %v384
    %1337 = vmatprep.subr.mxu0 0.0
    %1338 = vmatpush1.msra.mxu0 %v385
    %1339 = vmatprep.subr.mxu0 0.0
    %1340 = vmatpush1.msra.mxu0 %v386
    %1341 = vmatprep.subr.mxu0 0.0
    %1342 = vmatpush1.msra.mxu0 %v387
    %1343 = vmatprep.subr.mxu0 0.0
    %1344 = vmatpush1.msra.mxu0 %v388
    %1345 = vmatprep.subr.mxu0 0.0
    %1346 = vmatpush1.msra.mxu0 %v389
    %1347 = vmatprep.subr.mxu0 0.0
    %1348 = vmatpush1.msra.mxu0 %v390
    %1349 = vmatprep.subr.mxu0 0.0
    %1350 = vmatpush1.msra.mxu0 %v391
    %1351 = vmatprep.subr.mxu0 0.0
    %1352 = vmatpush1.msra.mxu0 %v392
    %1353 = vmatprep.subr.mxu0 0.0
    %1354 = vmatpush1.msra.mxu0 %v393
    %1355 = vmatprep.subr.mxu0 0.0
    %1356 = vmatpush1.msra.mxu0 %v394
    %1357 = vmatprep.subr.mxu0 0.0
    %1358 = vmatpush1.msra.mxu0 %v395
    %1359 = vmatprep.subr.mxu0 0.0
    %1360 = vmatpush1.msra.mxu0 %v396
    %1361 = vmatprep.subr.mxu0 0.0
    %1362 = vmatpush1.msra.mxu0 %v397
    %1363 = vmatprep.subr.mxu0 0.0
    %1364 = vmatpush1.msra.mxu0 %v398
    %1365 = vmatprep.subr.mxu0 0.0
    %1366 = vmatpush1.msra.mxu0 %v399
    %1367 = vmatprep.subr.mxu0 0.0
    %1368 = vmatpush1.msra.mxu0 %v400
    %1369 = vmatprep.subr.mxu0 0.0
    %1370 = vmatpush1.msra.mxu0 %v401
    %1371 = vmatprep.subr.mxu0 0.0
    %1372 = vmatpush1.msra.mxu0 %v402
    %1373 = vmatprep.subr.mxu0 0.0
    %1374 = vmatpush1.msra.mxu0 %v403
    %1375 = vmatprep.subr.mxu0 0.0
    %1376 = vmatpush1.msra.mxu0 %v404
    %1377 = vmatprep.subr.mxu0 0.0
    %1378 = vmatpush1.msra.mxu0 %v405
    %1379 = vmatprep.subr.mxu0 0.0
    %1380 = vmatpush1.msra.mxu0 %v406
    %1381 = vmatprep.subr.mxu0 0.0
    %1382 = vmatpush1.msra.mxu0 %v883
    %1383 = vmatprep.subr.mxu0 0.0
    %1384 = vmatpush1.msra.mxu0 0.0
    %1385 = vmatprep.mubr.f32.mxu0 %v1238
    %1386 = vmatmul.mubr.f32.gmra.mrb[0].mxu0 %v1181
    %v1387 = vpop.f32.mrb[0].mxu0
    %v1388 = vadd.f32 0.0, %v1387
    %v1389 = vpop.f32.mrb[0].mxu0
    %1390 = vmatprep.mubr.f32.mxu0 %v1241
    %1391 = vmatmul.mubr.f32.gmra.mrb[0].mxu0 %v1183
    %v1392 = vpop.f32.mrb[0].mxu0
    %v1393 = vadd.f32 0.0, %v1392
    %v1394 = vpop.f32.mrb[0].mxu0
    %1395 = vmatprep.mubr.f32.mxu0 %v1244
    %1396 = vmatmul.mubr.f32.gmra.mrb[0].mxu0 %v1185
    %v1397 = vpop.f32.mrb[0].mxu0
    %v1398 = vadd.f32 0.0, %v1397
    %v1399 = vpop.f32.mrb[0].mxu0
    %1400 = vmatprep.mubr.f32.mxu0 %v1247
    %1401 = vmatmul.mubr.f32.gmra.mrb[0].mxu0 %v1187
    %v1402 = vpop.f32.mrb[0].mxu0
    %v1403 = vadd.f32 0.0, %v1402
    %v1404 = vpop.f32.mrb[0].mxu0
    %1405 = vmatprep.mubr.f32.mxu0 %v1250
    %1406 = vmatmul.mubr.f32.gmra.mrb[0].mxu0 %v1189
    %v1407 = vpop.f32.mrb[0].mxu0
    %v1408 = vadd.f32 0.0, %v1407
    %v1409 = vpop.f32.mrb[0].mxu0
    %1410 = vmatprep.mubr.f32.mxu0 %v1253
    %1411 = vmatmul.mubr.f32.gmra.mrb[0].mxu0 %v1191
    %v1412 = vpop.f32.mrb[0].mxu0
    %v1413 = vadd.f32 0.0, %v1412
    %v1414 = vpop.f32.mrb[0].mxu0
    %1415 = vmatprep.mubr.f32.mxu0 %v1256
    %1416 = vmatmul.mubr.f32.gmra.mrb[0].mxu0 %v1193
    %v1417 = vpop.f32.mrb[0].mxu0
    %v1418 = vadd.f32 0.0, %v1417
    %v1419 = vpop.f32.mrb[0].mxu0
    %1420 = vmatprep.mubr.f32.mxu0 %v1259
    %1421 = vmatmul.mubr.f32.gmra.mrb[0].mxu0 %v1195
    %v1422 = vpop.f32.mrb[0].mxu0
    %v1423 = vadd.f32 0.0, %v1422
    %v1424 = vpop.f32.mrb[0].mxu0
    %1425 = vmatprep.mubr.f32.mxu0 %v1262
    %1426 = vmatmul.mubr.f32.gmra.mrb[0].mxu0 %v1197
    %v1427 = vpop.f32.mrb[0].mxu0
    %v1428 = vadd.f32 0.0, %v1427
    %v1429 = vpop.f32.mrb[0].mxu0
    %1430 = vmatprep.mubr.f32.mxu0 %v1265
    %1431 = vmatmul.mubr.f32.gmra.mrb[0].mxu0 %v1199
    %v1432 = vpop.f32.mrb[0].mxu0
    %v1433 = vadd.f32 0.0, %v1432
    %v1434 = vpop.f32.mrb[0].mxu0
    %1435 = vmatprep.mubr.f32.mxu0 %v1268
    %1436 = vmatmul.mubr.f32.gmra.mrb[0].mxu0 %v1201
    %v1437 = vpop.f32.mrb[0].mxu0
    %v1438 = vadd.f32 0.0, %v1437
    %v1439 = vpop.f32.mrb[0].mxu0
    %1440 = vmatprep.mubr.f32.mxu0 %v1271
    %1441 = vmatmul.mubr.f32.gmra.mrb[0].mxu0 %v1203
    %v1442 = vpop.f32.mrb[0].mxu0
    %v1443 = vadd.f32 0.0, %v1442
    %v1444 = vpop.f32.mrb[0].mxu0
    %1445 = vmatprep.mubr.f32.mxu0 %v1274
    %1446 = vmatmul.mubr.f32.gmra.mrb[0].mxu0 %v1205
    %v1447 = vpop.f32.mrb[0].mxu0
    %v1448 = vadd.f32 0.0, %v1447
    %v1449 = vpop.f32.mrb[0].mxu0
    %1450 = vmatprep.mubr.f32.mxu0 %v1277
    %1451 = vmatmul.mubr.f32.gmra.mrb[0].mxu0 %v1207
    %v1452 = vpop.f32.mrb[0].mxu0
    %v1453 = vadd.f32 0.0, %v1452
    %v1454 = vpop.f32.mrb[0].mxu0
    %1455 = vmatprep.mubr.f32.mxu0 %v1280
    %1456 = vmatmul.mubr.f32.gmra.mrb[0].mxu0 %v1209
    %v1457 = vpop.f32.mrb[0].mxu0
    %v1458 = vadd.f32 0.0, %v1457
    %v1459 = vpop.f32.mrb[0].mxu0
    %1460 = vmatprep.mubr.f32.mxu0 %v1283
    %1461 = vmatmul.mubr.f32.gmra.mrb[0].mxu0 %v1211
    %v1462 = vpop.f32.mrb[0].mxu0
    %v1463 = vadd.f32 0.0, %v1462
    %v1464 = vpop.f32.mrb[0].mxu0
    %1465 = vmatprep.mubr.f32.mxu0 %v1286
    %1466 = vmatmul.mubr.f32.gmra.mrb[0].mxu0 %v1213
    %v1467 = vpop.f32.mrb[0].mxu0
    %v1468 = vadd.f32 0.0, %v1467
    %v1469 = vpop.f32.mrb[0].mxu0
    %1470 = vmatprep.mubr.f32.mxu0 %v1289
    %1471 = vmatmul.mubr.f32.gmra.mrb[0].mxu0 %v1215
    %v1472 = vpop.f32.mrb[0].mxu0
    %v1473 = vadd.f32 0.0, %v1472
    %v1474 = vpop.f32.mrb[0].mxu0
    %1475 = vmatprep.mubr.f32.mxu0 %v1292
    %1476 = vmatmul.mubr.f32.gmra.mrb[0].mxu0 %v1217
    %v1477 = vpop.f32.mrb[0].mxu0
    %v1478 = vadd.f32 0.0, %v1477
    %v1479 = vpop.f32.mrb[0].mxu0
    %1480 = vmatprep.mubr.f32.mxu0 %v1295
    %1481 = vmatmul.mubr.f32.gmra.mrb[0].mxu0 %v1219
    %v1482 = vpop.f32.mrb[0].mxu0
    %v1483 = vadd.f32 0.0, %v1482
    %v1484 = vpop.f32.mrb[0].mxu0
    %1485 = vmatprep.mubr.f32.mxu0 %v1298
    %1486 = vmatmul.mubr.f32.gmra.mrb[0].mxu0 %v1221
    %v1487 = vpop.f32.mrb[0].mxu0
    %v1488 = vadd.f32 0.0, %v1487
    %v1489 = vpop.f32.mrb[0].mxu0
    %1490 = vmatprep.mubr.f32.mxu0 %v1301
    %1491 = vmatmul.mubr.f32.gmra.mrb[0].mxu0 %v1223
    %v1492 = vpop.f32.mrb[0].mxu0
    %v1493 = vadd.f32 0.0, %v1492
    %v1494 = vpop.f32.mrb[0].mxu0
    %1495 = vmatprep.mubr.f32.mxu0 %v1304
    %1496 = vmatmul.mubr.f32.gmra.mrb[0].mxu0 %v1225
    %v1497 = vpop.f32.mrb[0].mxu0
    %v1498 = vadd.f32 0.0, %v1497
    %v1499 = vpop.f32.mrb[0].mxu0
    %1500 = vmatprep.mubr.f32.mxu0 %v1307
    %1501 = vmatmul.mubr.f32.gmra.mrb[0].mxu0 %v1227
    %v1502 = vpop.f32.mrb[0].mxu0
    %v1503 = vadd.f32 0.0, %v1502
    %v1504 = vpop.f32.mrb[0].mxu0
    %1505 = vmatprep.mubr.f32.mxu0 %v1310
    %1506 = vmatmul.mubr.f32.gmra.mrb[0].mxu0 %v1229
    %v1507 = vpop.f32.mrb[0].mxu0
    %v1508 = vadd.f32 0.0, %v1507
    %v1509 = vpop.f32.mrb[0].mxu0
    %1510 = vmatprep.mubr.f32.mxu0 %v1313
    %1511 = vmatmul.mubr.f32.gmra.mrb[0].mxu0 %v1231
    %v1512 = vpop.f32.mrb[0].mxu0
    %v1513 = vadd.f32 0.0, %v1512
    %v1514 = vpop.f32.mrb[0].mxu0
    %1515 = vmatprep.mubr.f32.mxu0 %v1316
    %1516 = vmatmul.mubr.f32.gmra.mrb[0].mxu0 %v1233
    %v1517 = vpop.f32.mrb[0].mxu0
    %v1518 = vadd.f32 0.0, %v1517
    %v1519 = vpop.f32.mrb[0].mxu0
    %1520 = vmatprep.mubr.f32.mxu0 %v1319
    %1521 = vmatmul.mubr.f32.gmra.mrb[0].mxu0 %v1235
    %v1522 = vpop.f32.mrb[0].mxu0
    %v1523 = vadd.f32 0.0, %v1522
    %v1524 = vpop.f32.mrb[0].mxu0
    %1525 = vdwg.mxu0
    %v1526 = vmul.f32 %v1388, %v706
    %v1527 = vmul.f32 %v1393, %v707
    %v1528 = vmul.f32 %v1398, %v708
    %v1529 = vmul.f32 %v1403, %v709
    %v1530 = vmul.f32 %v1408, %v710
    %v1531 = vmul.f32 %v1413, %v711
    %v1532 = vmul.f32 %v1418, %v712
    %v1533 = vmul.f32 %v1423, %v713
    %v1534 = vmul.f32 %v1428, %v714
    %v1535 = vmul.f32 %v1433, %v715
    %v1536 = vmul.f32 %v1438, %v716
    %v1537 = vmul.f32 %v1443, %v717
    %v1538 = vmul.f32 %v1448, %v718
    %v1539 = vmul.f32 %v1453, %v719
    %v1540 = vmul.f32 %v1458, %v720
    %v1541 = vmul.f32 %v1463, %v721
    %v1542 = vmul.f32 %v1468, %v722
    %v1543 = vmul.f32 %v1473, %v723
    %v1544 = vmul.f32 %v1478, %v724
    %v1545 = vmul.f32 %v1483, %v725
    %v1546 = vmul.f32 %v1488, %v726
    %v1547 = vmul.f32 %v1493, %v727
    %v1548 = vmul.f32 %v1498, %v728
    %v1549 = vmul.f32 %v1503, %v729
    %v1550 = vmul.f32 %v1508, %v730
    %v1551 = vmul.f32 %v1513, %v731
    %v1552 = vmul.f32 %v1518, %v732
    %v1553 = vmul.f32 %v1523, %v733
    %v1554 = vsel %vm1118, %v1526, 0.0
    %v1555 = vsel %vm1118, %v1527, 0.0
    %v1556 = vadd.f32 %v1554, %v1555
    %v1557 = vsel %vm1118, %v1528, 0.0
    %v1558 = vadd.f32 %v1556, %v1557
    %v1559 = vsel %vm1118, %v1529, 0.0
    %v1560 = vadd.f32 %v1558, %v1559
    %v1561 = vsel %vm1118, %v1530, 0.0
    %v1562 = vadd.f32 %v1560, %v1561
    %v1563 = vsel %vm1118, %v1531, 0.0
    %v1564 = vadd.f32 %v1562, %v1563
    %v1565 = vsel %vm1118, %v1532, 0.0
    %v1566 = vadd.f32 %v1564, %v1565
    %v1567 = vsel %vm1118, %v1533, 0.0
    %v1568 = vadd.f32 %v1566, %v1567
    %v1569 = vsel %vm1118, %v1534, 0.0
    %v1570 = vadd.f32 %v1568, %v1569
    %v1571 = vsel %vm1118, %v1535, 0.0
    %v1572 = vadd.f32 %v1570, %v1571
    %v1573 = vsel %vm1118, %v1536, 0.0
    %v1574 = vadd.f32 %v1572, %v1573
    %v1575 = vsel %vm1118, %v1537, 0.0
    %v1576 = vadd.f32 %v1574, %v1575
    %v1577 = vsel %vm1118, %v1538, 0.0
    %v1578 = vadd.f32 %v1576, %v1577
    %v1579 = vsel %vm1118, %v1539, 0.0
    %v1580 = vadd.f32 %v1578, %v1579
    %v1581 = vsel %vm1118, %v1540, 0.0
    %v1582 = vadd.f32 %v1580, %v1581
    %v1583 = vsel %vm1118, %v1541, 0.0
    %v1584 = vadd.f32 %v1582, %v1583
    %v1585 = vsel %vm1118, %v1542, 0.0
    %v1586 = vadd.f32 %v1584, %v1585
    %v1587 = vsel %vm1118, %v1543, 0.0
    %v1588 = vadd.f32 %v1586, %v1587
    %v1589 = vsel %vm1118, %v1544, 0.0
    %v1590 = vadd.f32 %v1588, %v1589
    %v1591 = vsel %vm1118, %v1545, 0.0
    %v1592 = vadd.f32 %v1590, %v1591
    %v1593 = vsel %vm1118, %v1546, 0.0
    %v1594 = vadd.f32 %v1592, %v1593
    %v1595 = vsel %vm1118, %v1547, 0.0
    %v1596 = vadd.f32 %v1594, %v1595
    %v1597 = vsel %vm1118, %v1548, 0.0
    %v1598 = vadd.f32 %v1596, %v1597
    %v1599 = vsel %vm1118, %v1549, 0.0
    %v1600 = vadd.f32 %v1598, %v1599
    %v1601 = vsel %vm1118, %v1550, 0.0
    %v1602 = vadd.f32 %v1600, %v1601
    %v1603 = vsel %vm1118, %v1551, 0.0
    %v1604 = vadd.f32 %v1602, %v1603
    %v1605 = vsel %vm1118, %v1552, 0.0
    %v1606 = vadd.f32 %v1604, %v1605
    %v1607 = vsel %vm1118, %v1553, 0.0
    %v1608 = vadd.f32 %v1606, %v1607
    %v1609 = vrot.slane %v1608, 4
    %v1610 = vadd.f32 %v1608, %v1609
    %v1611 = vrot.slane %v1610, 2
    %v1612 = vadd.f32 %v1610, %v1611
    %v1613 = vrot.slane %v1612, 1
    %v1614 = vadd.f32 %v1612, %v1613
    %v1615 = vld [vmem:[#allocation2] sm:$0x3]
    %vm1616 = vcmask 1040384
    %v1617 = vsel %vm1616, %v1179, %v1614
    %v1618 = vadd.f32 %v1615, %v1617
    %vm1619 = vcmask 123904
    %1620 = vst.msk [vmem:[#allocation2] sm:$0x3] %vm1619, %v1618
    // Predicated region
    $region22: #{tpu_custom_call.1} parent=1 // pred_check
      %p1621 = pneg %p734
    $region23: #{tpu_custom_call.1} parent=1 // pred_check_branch
      %1623 = sbr.rel (%p1621) target = $region25
    $region24: #{tpu_custom_call.1} parent=1 // pred_region
      %v1624 = vld [vmem:[#allocation2] sm:$0x3]
      %1625 = vst.msk [vmem:[#allocation8] sm:$0x3] %vm1619, %v1624
    $region25: #{tpu_custom_call.1} parent=1 // pred_fallthru
      _
    // Predicated region
    $region26: #{tpu_custom_call.1} parent=1 // pred_check
      _
    $region27: #{tpu_custom_call.1} parent=1 // pred_check_branch
      %1627 = sbr.rel (0) target = $region29
    $region28: #{tpu_custom_call.1} parent=1 // pred_region
      %s1629 = ssub.s32 32, 32
      %1630 = vsyncadd [#allocation5], %s1629
      %s1632 = sshll.u32 [#allocation8], 4
      %s1633 = int_to_ptr.vmem [resolvable:$true] %s1632
      %1635 = dma.vmem_to_hbm [thread:$0]  %s1633, 32, %s2, [#allocation5]
    $region29: #{tpu_custom_call.1} parent=1 // pred_fallthru
      _
    // Predicated region
    $region30: #{tpu_custom_call.1} parent=1 // pred_check
      _
    $region31: #{tpu_custom_call.1} parent=1 // pred_check_branch
      %1637 = sbr.rel (0) target = $region33
    $region32: #{tpu_custom_call.1} parent=1 // pred_region
      %1638 = dma.done [#allocation5], 32
    $region33: #{tpu_custom_call.1} parent=1 // pred_fallthru
      _
    %1639 = vsyncpa [#allocation4], 1
    %1640 = vsyncpa [#allocation7], 1
    %1641 = vsyncpa [#allocation5], 1

</llo_original>
